<compile_context>
chip_gen: v7x
topology: tpu7x:2x2x1
jax: 0.10.0
libtpu: 0.0.40
codegen_flags: <defaults>
</compile_context>

<pallas_src>
import math

import jax
import jax.numpy as jnp
import numpy as np
from jax.experimental import pallas as pl
from jax.experimental.pallas import tpu as pltpu


def make_wavenet_kernel(*, T, pad, res_ch, gate_ch, skip_ch, num_layers):
    gate_half = gate_ch // 2
    inv_sqrt2 = math.sqrt(0.5)
    skip_scale = math.sqrt(1.0 / num_layers)          # legacy=False normalization

    def kernel(dil_ref,                                # scalar-prefetch (SMEM)
               x_ref, wf_ref, bf_ref,
               wc_ref, bc_ref, ws_ref, bs_ref, wo_ref, bo_ref,
               wl1_ref, bl1_ref, wl2_ref, bl2_ref,
               o_ref,
               h_pad, skips):                          # VMEM scratch
        l = pl.program_id(1)
        last = pl.num_programs(1) - 1
        d = dil_ref[l]                                 # this layer's dilation

        # ---- init (per batch element): first_conv + zero causal pad / skips
        @pl.when(l == 0)
        def _():
            xb = x_ref[0]                                          # [T, 1]
            h0 = xb * wf_ref[...] + bf_ref[...]                    # [T, R] f32
            h_pad[pl.ds(0, pad), :] = jnp.zeros((pad, res_ch), jnp.float32)
            h_pad[pl.ds(pad, T), :] = h0
            skips[...] = jnp.zeros_like(skips)

        # ---- ResidualConv1dGLU for layer l
        residual = h_pad[pl.ds(pad, T), :]                         # [T, R] f32
        h2 = h_pad[pl.ds(pad - 2 * d, T), :]                       # shift 2d
        h1 = h_pad[pl.ds(pad - d, T), :]                           # shift  d
        hcat = jnp.concatenate([h2, h1, residual], axis=-1)        # [T, 3R]
        y = jnp.dot(hcat.astype(jnp.bfloat16), wc_ref[0],
                    preferred_element_type=jnp.float32) + bc_ref[0]  # [T, G]

        a = y[:, :gate_half]
        g = y[:, gate_half:]
        z = (jnp.tanh(a) * jax.nn.sigmoid(g)).astype(jnp.bfloat16)   # [T, G/2]

        skips[...] = (skips[...]
                      + jnp.dot(z, ws_ref[0], preferred_element_type=jnp.float32)
                      + bs_ref[0])
        out = jnp.dot(z, wo_ref[0], preferred_element_type=jnp.float32) + bo_ref[0]
        h_pad[pl.ds(pad, T), :] = (out + residual) * inv_sqrt2

        # ---- finalize: last conv stack, lane-dense (padded) output store
        @pl.when(l == last)
        def _():
            s = jnp.maximum(skips[...] * skip_scale, 0.0).astype(jnp.bfloat16)
            s = jnp.dot(s, wl1_ref[...],
                        preferred_element_type=jnp.float32) + bl1_ref[...]
            s = jnp.maximum(s, 0.0).astype(jnp.bfloat16)
            o_ref[0] = jnp.dot(s, wl2_ref[...],
                               preferred_element_type=jnp.float32) + bl2_ref[...]

    return kernel


def init_params(key, *, num_mixtures, num_layers, stacks=2,
                residual_channels=512, gate_channels=512,
                skip_channels=512, kernel_size=3):
    """Deterministic synthetic parameters (shapes as implied by WaveNet.__init__)."""
    assert num_layers % stacks == 0 and kernel_size == 3
    out_channels = num_mixtures * 3
    layers_per_stack = num_layers // stacks
    dilations = tuple(2 ** (l % layers_per_stack) for l in range(num_layers))
    gh = gate_channels // 2
    ks = jax.random.split(key, 12)

    def n(k, shape, scale=0.1):
        return scale * jax.random.normal(k, shape, jnp.float32)

    params = dict(
        wf=n(ks[0], (1, residual_channels)),                      # first_conv W (1->R)
        bf=n(ks[1], (1, residual_channels), 0.01),
        wc=n(ks[2], (num_layers, kernel_size,
                     residual_channels, gate_channels)),          # dilated conv, tap-major
        bc=n(ks[3], (num_layers, 1, gate_channels), 0.01),
        ws=n(ks[4], (num_layers, gh, skip_channels)),             # conv1x1_skip
        bs=n(ks[5], (num_layers, 1, skip_channels), 0.01),
        wo=n(ks[6], (num_layers, gh, residual_channels)),         # conv1x1_out
        bo=n(ks[7], (num_layers, 1, residual_channels), 0.01),
        wl1=n(ks[8], (skip_channels, skip_channels)),             # last conv 1
        bl1=n(ks[9], (1, skip_channels), 0.01),
        wl2=n(ks[10], (skip_channels, out_channels)),             # last conv 2
        bl2=n(ks[11], (1, out_channels), 0.01),
    )
    cfg = dict(num_layers=num_layers, dilations=dilations,
               residual_channels=residual_channels,
               gate_channels=gate_channels, skip_channels=skip_channels,
               out_channels=out_channels,
               receptive_field=(kernel_size - 1) * sum(dilations) + 1)
    return params, cfg


def wavenet_forward(params, cfg, x):
    """x: [B, 1, T] float32 -> [B, out_channels, T] (matches WaveNetModel.forward)."""
    B, cin, T = x.shape
    assert cin == 1, "scalar_input=True expects a single input channel"
    L = cfg["num_layers"]
    R = cfg["residual_channels"]
    G = cfg["gate_channels"]
    S = cfg["skip_channels"]
    C_out = cfg["out_channels"]
    C_pad = max(128, ((C_out + 127) // 128) * 128)        # lane-dense output slab
    max_d = max(cfg["dilations"])
    pad = ((2 * max_d + 7) // 8) * 8                      # causal zero-pad rows

    x_btc = jnp.transpose(x, (0, 2, 1)).astype(jnp.float32)        # [B, T, 1]

    bf16 = jnp.bfloat16
    wf = params["wf"].astype(jnp.float32)
    bf = params["bf"].astype(jnp.float32)
    wc = params["wc"].reshape(L, 3 * R, G).astype(bf16)            # tap-stacked K=3R
    bc = params["bc"].astype(jnp.float32)
    ws = params["ws"].astype(bf16)
    bs = params["bs"].astype(jnp.float32)
    wo = params["wo"].astype(bf16)
    bo = params["bo"].astype(jnp.float32)
    wl1 = params["wl1"].astype(bf16)
    bl1 = params["bl1"].astype(jnp.float32)
    wl2 = jnp.zeros((S, C_pad), bf16).at[:, :C_out].set(params["wl2"].astype(bf16))
    bl2 = jnp.zeros((1, C_pad), jnp.float32).at[:, :C_out].set(params["bl2"])

    dilations = jnp.asarray(cfg["dilations"], jnp.int32)

    kernel = make_wavenet_kernel(T=T, pad=pad, res_ch=R, gate_ch=G,
                                 skip_ch=S, num_layers=L)

    # index_maps receive (b, l, dil_ref) because of num_scalar_prefetch=1.
    def rep(arr):         # small weights, resident across the whole grid
        nd = arr.ndim
        return pl.BlockSpec(arr.shape, lambda b, l, dil, nd=nd: (0,) * nd)

    def per_layer(arr):   # stream one layer's slice per grid step
        blk = (1,) + arr.shape[1:]
        nd = arr.ndim
        return pl.BlockSpec(blk, lambda b, l, dil, nd=nd: (l,) + (0,) * (nd - 1))

    in_specs = [
        pl.BlockSpec((1, T, 1), lambda b, l, dil: (b, 0, 0)),      # x (per batch)
        rep(wf), rep(bf),
        per_layer(wc), per_layer(bc),
        per_layer(ws), per_layer(bs),
        per_layer(wo), per_layer(bo),
        rep(wl1), rep(bl1), rep(wl2), rep(bl2),
    ]

    # Explicit VMEM budget: double-buffered layer weights + resident weights
    # + activation scratch + in/out blocks, with headroom.
    def nbytes(a):
        return int(a.size) * a.dtype.itemsize
    per_layer_bytes = (nbytes(wc) + nbytes(bc) + nbytes(ws) + nbytes(bs)
                       + nbytes(wo) + nbytes(bo)) // L
    resident_bytes = sum(nbytes(a) for a in (wf, bf, wl1, bl1, wl2, bl2))
    scratch_bytes = (T + pad) * R * 4 + T * S * 4
    io_bytes = T * 4 + T * C_pad * 4
    vmem_limit = max(int(1.5 * (2 * (per_layer_bytes + io_bytes)
                                + resident_bytes + scratch_bytes)) + (4 << 20),
                     32 << 20)

    out = pl.pallas_call(
        kernel,
        out_shape=jax.ShapeDtypeStruct((B, T, C_pad), jnp.float32),
        grid_spec=pltpu.PrefetchScalarGridSpec(
            num_scalar_prefetch=1,
            grid=(B, L),
            in_specs=in_specs,
            out_specs=pl.BlockSpec((1, T, C_pad), lambda b, l, dil: (b, 0, 0)),
            scratch_shapes=[pltpu.VMEM((T + pad, R), jnp.float32),   # padded h
                            pltpu.VMEM((T, S), jnp.float32)],        # skip accum
        ),
        compiler_params=pltpu.CompilerParams(
            dimension_semantics=("parallel", "arbitrary"),
            vmem_limit_bytes=vmem_limit),
    )(dilations, x_btc, wf, bf, wc, bc, ws, bs, wo, bo, wl1, bl1, wl2, bl2)

    return jnp.transpose(out[:, :, :C_out], (0, 2, 1))               # [B, C_out, T]


def wavenet_reference(params, cfg, x):
    """Plain-JAX reference (same math; big weights rounded to bf16 like the kernel)."""
    def q(w):
        return w.astype(jnp.bfloat16).astype(jnp.float32)

    B, _, T = x.shape
    h = jnp.transpose(x, (0, 2, 1)).astype(jnp.float32)              # [B, T, 1]
    h = h * params["wf"][None] + params["bf"][None]                  # [B, T, R]
    gh = cfg["gate_channels"] // 2
    skips = jnp.zeros((B, T, cfg["skip_channels"]), jnp.float32)
    for l, d in enumerate(cfg["dilations"]):
        residual = h
        y = params["bc"][l][None]
        for k in range(3):
            s = (2 - k) * d
            hs = jnp.pad(h, ((0, 0), (s, 0), (0, 0)))[:, :T, :]
            y = y + jnp.einsum("btr,rg->btg", hs, q(params["wc"][l, k]))
        z = jnp.tanh(y[..., :gh]) * jax.nn.sigmoid(y[..., gh:])
        skips = skips + jnp.einsum("btg,gs->bts", z, q(params["ws"][l])) + params["bs"][l][None]
        h = (jnp.einsum("btg,gr->btr", z, q(params["wo"][l])) + params["bo"][l][None]
             + residual) * math.sqrt(0.5)
    s = skips * math.sqrt(1.0 / cfg["num_layers"])
    s = jax.nn.relu(s)
    s = jnp.einsum("bts,su->btu", s, q(params["wl1"])) + params["bl1"][None]
    s = jax.nn.relu(s)
    s = jnp.einsum("bts,so->bto", s, q(params["wl2"])) + params["bl2"][None]
    return jnp.transpose(s, (0, 2, 1))


if __name__ == "__main__":
    key = jax.random.PRNGKey(0)
    kp, kx = jax.random.split(key)

    # Small demo config (constructor args num_mixtures / num_layers; internal
    # channel widths reduced from the 512 defaults to keep the demo small).
    num_mixtures, num_layers = 2, 4
    params, cfg = init_params(kp, num_mixtures=num_mixtures, num_layers=num_layers,
                              residual_channels=64, gate_channels=128,
                              skip_channels=64)

    B, T = 2, 128
    x = jax.random.normal(kx, (B, 1, T), jnp.float32)                # [B, C=1, T]

    y = jax.block_until_ready(wavenet_forward(params, cfg, x))
    assert y.shape == (B, cfg["out_channels"], T), y.shape

    y_ref = jax.block_until_ready(wavenet_reference(params, cfg, x))
    np.testing.assert_allclose(np.asarray(y), np.asarray(y_ref),
                               rtol=2e-2, atol=2e-2)
    print("KERNEL_OK")
</pallas_src>

<mosaic_0001>
module attributes {stable_mosaic.version = 11 : i64} {
  func.func @kernel(%arg0: i32, %arg1: i32, %arg2: memref<4xi32, #tpu.memory_space<smem>>, %arg3: memref<1x128x1xf32, #tpu.memory_space<vmem>>, %arg4: memref<1x64xf32, #tpu.memory_space<vmem>>, %arg5: memref<1x64xf32, #tpu.memory_space<vmem>>, %arg6: memref<1x192x128xbf16, #tpu.memory_space<vmem>>, %arg7: memref<1x1x128xf32, #tpu.memory_space<vmem>>, %arg8: memref<1x64x64xbf16, #tpu.memory_space<vmem>>, %arg9: memref<1x1x64xf32, #tpu.memory_space<vmem>>, %arg10: memref<1x64x64xbf16, #tpu.memory_space<vmem>>, %arg11: memref<1x1x64xf32, #tpu.memory_space<vmem>>, %arg12: memref<64x64xbf16, #tpu.memory_space<vmem>>, %arg13: memref<1x64xf32, #tpu.memory_space<vmem>>, %arg14: memref<64x128xbf16, #tpu.memory_space<vmem>>, %arg15: memref<1x128xf32, #tpu.memory_space<vmem>>, %arg16: memref<1x128x128xf32, #tpu.memory_space<vmem>>, %arg17: memref<136x64xf32, #tpu.memory_space<vmem>>, %arg18: memref<128x64xf32, #tpu.memory_space<vmem>>) attributes {dimension_semantics = [#tpu.dimension_semantics<parallel>, #tpu.dimension_semantics<arbitrary>], iteration_bounds = array<i64: 2, 4>, scalar_prefetch = 1 : i64, scratch_operands = 2 : i64, tpu.core_type = #tpu.core_type<tc>, window_params = [{transform_indices = @transform_0, window_bounds = array<i64: 1, 128, 1>}, {pipeline_mode = #tpu.pipeline_mode<synchronous>, transform_indices = @transform_1, window_bounds = array<i64: 1, 64>}, {pipeline_mode = #tpu.pipeline_mode<synchronous>, transform_indices = @transform_2, window_bounds = array<i64: 1, 64>}, {transform_indices = @transform_3, window_bounds = array<i64: 1, 192, 128>}, {transform_indices = @transform_4, window_bounds = array<i64: 1, 1, 128>}, {transform_indices = @transform_5, window_bounds = array<i64: 1, 64, 64>}, {transform_indices = @transform_6, window_bounds = array<i64: 1, 1, 64>}, {transform_indices = @transform_7, window_bounds = array<i64: 1, 64, 64>}, {transform_indices = @transform_8, window_bounds = array<i64: 1, 1, 64>}, {pipeline_mode = #tpu.pipeline_mode<synchronous>, transform_indices = @transform_9, window_bounds = array<i64: 64, 64>}, {pipeline_mode = #tpu.pipeline_mode<synchronous>, transform_indices = @transform_10, window_bounds = array<i64: 1, 64>}, {pipeline_mode = #tpu.pipeline_mode<synchronous>, transform_indices = @transform_11, window_bounds = array<i64: 64, 128>}, {pipeline_mode = #tpu.pipeline_mode<synchronous>, transform_indices = @transform_12, window_bounds = array<i64: 1, 128>}, {transform_indices = @transform_13, window_bounds = array<i64: 1, 128, 128>}]} {
    %0 = arith.index_cast %arg1 : i32 to index
    %1 = memref.load %arg2[%0] : memref<4xi32, #tpu.memory_space<smem>>
    %c0_i32 = arith.constant 0 : i32
    %2 = arith.cmpi eq, %arg1, %c0_i32 : i32
    %3 = arith.extui %2 : i1 to i32
    %c0_i32_0 = arith.constant 0 : i32
    %4 = arith.cmpi ne, %3, %c0_i32_0 : i32
    scf.if %4 {
      %c0_33 = arith.constant 0 : index
      %c0_34 = arith.constant 0 : index
      %c0_35 = arith.constant 0 : index
      %56 = vector.load %arg3[%c0_33, %c0_34, %c0_35] : memref<1x128x1xf32, #tpu.memory_space<vmem>>, vector<1x128x1xf32>
      %57 = vector.shape_cast %56 : vector<1x128x1xf32> to vector<128x1xf32>
      %c0_36 = arith.constant 0 : index
      %c0_37 = arith.constant 0 : index
      %58 = vector.load %arg4[%c0_36, %c0_37] : memref<1x64xf32, #tpu.memory_space<vmem>>, vector<1x64xf32>
      %59 = vector.broadcast %57 : vector<128x1xf32> to vector<128x64xf32>
      %60 = vector.broadcast %58 : vector<1x64xf32> to vector<128x64xf32>
      %61 = arith.mulf %59, %60 : vector<128x64xf32>
      %c0_38 = arith.constant 0 : index
      %c0_39 = arith.constant 0 : index
      %62 = vector.load %arg5[%c0_38, %c0_39] : memref<1x64xf32, #tpu.memory_space<vmem>>, vector<1x64xf32>
      %63 = vector.broadcast %62 : vector<1x64xf32> to vector<128x64xf32>
      %64 = arith.addf %61, %63 : vector<128x64xf32>
      %cst_40 = arith.constant 0.000000e+00 : f32
      %65 = vector.broadcast %cst_40 : f32 to vector<8x64xf32>
      %c0_41 = arith.constant 0 : index
      %c0_42 = arith.constant 0 : index
      %66 = vector.load %arg17[%c0_41, %c0_42] : memref<136x64xf32, #tpu.memory_space<vmem>>, vector<8x64xf32>
      tpu.vector_store %arg17[%c0_41, %c0_42], %65 {strides = array<i32>} : memref<136x64xf32, #tpu.memory_space<vmem>>, vector<8x64xf32>,
      %c8_43 = arith.constant 8 : index
      %c0_44 = arith.constant 0 : index
      %67 = vector.load %arg17[%c8_43, %c0_44] : memref<136x64xf32, #tpu.memory_space<vmem>>, vector<128x64xf32>
      tpu.vector_store %arg17[%c8_43, %c0_44], %64 {strides = array<i32>} : memref<136x64xf32, #tpu.memory_space<vmem>>, vector<128x64xf32>,
      %cst_45 = arith.constant 0.000000e+00 : f32
      %68 = vector.broadcast %cst_45 : f32 to vector<128x64xf32>
      %c0_46 = arith.constant 0 : index
      %c0_47 = arith.constant 0 : index
      %69 = vector.load %arg18[%c0_46, %c0_47] : memref<128x64xf32, #tpu.memory_space<vmem>>, vector<128x64xf32>
      tpu.vector_store %arg18[%c0_46, %c0_47], %68 {strides = array<i32>} : memref<128x64xf32, #tpu.memory_space<vmem>>, vector<128x64xf32>,
    } else {
    }
    %c8 = arith.constant 8 : index
    %c0 = arith.constant 0 : index
    %5 = vector.load %arg17[%c8, %c0] : memref<136x64xf32, #tpu.memory_space<vmem>>, vector<128x64xf32>
    %c2_i32 = arith.constant 2 : i32
    %6 = arith.muli %c2_i32, %1 : i32
    %c8_i32 = arith.constant 8 : i32
    %7 = arith.subi %c8_i32, %6 : i32
    %8 = arith.index_cast %7 : i32 to index
    %c0_1 = arith.constant 0 : index
    %9 = vector.load %arg17[%8, %c0_1] : memref<136x64xf32, #tpu.memory_space<vmem>>, vector<128x64xf32>
    %c8_i32_2 = arith.constant 8 : i32
    %10 = arith.subi %c8_i32_2, %1 : i32
    %11 = arith.index_cast %10 : i32 to index
    %c0_3 = arith.constant 0 : index
    %12 = vector.load %arg17[%11, %c0_3] : memref<136x64xf32, #tpu.memory_space<vmem>>, vector<128x64xf32>
    %13 = tpu.concatenate %9, %12, %5 in 1 : vector<128x64xf32>, vector<128x64xf32>, vector<128x64xf32> -> vector<128x192xf32>
    %14 = arith.truncf %13 : vector<128x192xf32> to vector<128x192xbf16>
    %c0_4 = arith.constant 0 : index
    %c0_5 = arith.constant 0 : index
    %c0_6 = arith.constant 0 : index
    %15 = vector.load %arg6[%c0_4, %c0_5, %c0_6] : memref<1x192x128xbf16, #tpu.memory_space<vmem>>, vector<1x192x128xbf16>
    %16 = vector.shape_cast %15 : vector<1x192x128xbf16> to vector<192x128xbf16>
    %cst = arith.constant dense<0.000000e+00> : vector<128x128xf32>
    %17 = tpu.matmul %14, %16, %cst {dimension_numbers = #tpu.dot_dimension_numbers<[1], [0], [0], [1], [0, 0, 1, 1], [], []>} : vector<128x192xbf16>, vector<192x128xbf16>, vector<128x128xf32> -> vector<128x128xf32>
    %c0_7 = arith.constant 0 : index
    %c0_8 = arith.constant 0 : index
    %c0_9 = arith.constant 0 : index
    %18 = vector.load %arg7[%c0_7, %c0_8, %c0_9] : memref<1x1x128xf32, #tpu.memory_space<vmem>>, vector<1x1x128xf32>
    %19 = vector.shape_cast %18 : vector<1x1x128xf32> to vector<1x128xf32>
    %20 = vector.broadcast %19 : vector<1x128xf32> to vector<128x128xf32>
    %21 = arith.addf %17, %20 : vector<128x128xf32>
    %22 = vector.extract_strided_slice %21 {offsets = [0, 0], sizes = [128, 64], strides = [1, 1]} : vector<128x128xf32> to vector<128x64xf32>
    %23 = vector.extract_strided_slice %21 {offsets = [0, 64], sizes = [128, 64], strides = [1, 1]} : vector<128x128xf32> to vector<128x64xf32>
    %24 = math.tanh %22 : vector<128x64xf32>
    %25 = arith.negf %23 : vector<128x64xf32>
    %26 = math.exp %25 : vector<128x64xf32>
    %cst_10 = arith.constant 1.000000e+00 : f32
    %27 = vector.broadcast %cst_10 : f32 to vector<128x64xf32>
    %28 = arith.addf %27, %26 : vector<128x64xf32>
    %29 = arith.divf %27, %28 : vector<128x64xf32>
    %30 = arith.mulf %24, %29 : vector<128x64xf32>
    %31 = arith.truncf %30 : vector<128x64xf32> to vector<128x64xbf16>
    %c0_11 = arith.constant 0 : index
    %c0_12 = arith.constant 0 : index
    %32 = vector.load %arg18[%c0_11, %c0_12] : memref<128x64xf32, #tpu.memory_space<vmem>>, vector<128x64xf32>
    %c0_13 = arith.constant 0 : index
    %c0_14 = arith.constant 0 : index
    %c0_15 = arith.constant 0 : index
    %33 = vector.load %arg8[%c0_13, %c0_14, %c0_15] : memref<1x64x64xbf16, #tpu.memory_space<vmem>>, vector<1x64x64xbf16>
    %34 = vector.shape_cast %33 : vector<1x64x64xbf16> to vector<64x64xbf16>
    %cst_16 = arith.constant dense<0.000000e+00> : vector<128x64xf32>
    %35 = tpu.matmul %31, %34, %cst_16 {dimension_numbers = #tpu.dot_dimension_numbers<[1], [0], [0], [1], [0, 0, 1, 1], [], []>} : vector<128x64xbf16>, vector<64x64xbf16>, vector<128x64xf32> -> vector<128x64xf32>
    %36 = arith.addf %32, %35 : vector<128x64xf32>
    %c0_17 = arith.constant 0 : index
    %c0_18 = arith.constant 0 : index
    %c0_19 = arith.constant 0 : index
    %37 = vector.load %arg9[%c0_17, %c0_18, %c0_19] : memref<1x1x64xf32, #tpu.memory_space<vmem>>, vector<1x1x64xf32>
    %38 = vector.shape_cast %37 : vector<1x1x64xf32> to vector<1x64xf32>
    %39 = vector.broadcast %38 : vector<1x64xf32> to vector<128x64xf32>
    %40 = arith.addf %36, %39 : vector<128x64xf32>
    %c0_20 = arith.constant 0 : index
    %c0_21 = arith.constant 0 : index
    %41 = vector.load %arg18[%c0_20, %c0_21] : memref<128x64xf32, #tpu.memory_space<vmem>>, vector<128x64xf32>
    tpu.vector_store %arg18[%c0_20, %c0_21], %40 {strides = array<i32>} : memref<128x64xf32, #tpu.memory_space<vmem>>, vector<128x64xf32>,
    %c0_22 = arith.constant 0 : index
    %c0_23 = arith.constant 0 : index
    %c0_24 = arith.constant 0 : index
    %42 = vector.load %arg10[%c0_22, %c0_23, %c0_24] : memref<1x64x64xbf16, #tpu.memory_space<vmem>>, vector<1x64x64xbf16>
    %43 = vector.shape_cast %42 : vector<1x64x64xbf16> to vector<64x64xbf16>
    %cst_25 = arith.constant dense<0.000000e+00> : vector<128x64xf32>
    %44 = tpu.matmul %31, %43, %cst_25 {dimension_numbers = #tpu.dot_dimension_numbers<[1], [0], [0], [1], [0, 0, 1, 1], [], []>} : vector<128x64xbf16>, vector<64x64xbf16>, vector<128x64xf32> -> vector<128x64xf32>
    %c0_26 = arith.constant 0 : index
    %c0_27 = arith.constant 0 : index
    %c0_28 = arith.constant 0 : index
    %45 = vector.load %arg11[%c0_26, %c0_27, %c0_28] : memref<1x1x64xf32, #tpu.memory_space<vmem>>, vector<1x1x64xf32>
    %46 = vector.shape_cast %45 : vector<1x1x64xf32> to vector<1x64xf32>
    %47 = vector.broadcast %46 : vector<1x64xf32> to vector<128x64xf32>
    %48 = arith.addf %44, %47 : vector<128x64xf32>
    %49 = arith.addf %48, %5 : vector<128x64xf32>
    %cst_29 = arith.constant 0.707106769 : f32
    %50 = vector.broadcast %cst_29 : f32 to vector<128x64xf32>
    %51 = arith.mulf %49, %50 : vector<128x64xf32>
    %c8_30 = arith.constant 8 : index
    %c0_31 = arith.constant 0 : index
    %52 = vector.load %arg17[%c8_30, %c0_31] : memref<136x64xf32, #tpu.memory_space<vmem>>, vector<128x64xf32>
    tpu.vector_store %arg17[%c8_30, %c0_31], %51 {strides = array<i32>} : memref<136x64xf32, #tpu.memory_space<vmem>>, vector<128x64xf32>,
    %c3_i32 = arith.constant 3 : i32
    %53 = arith.cmpi eq, %arg1, %c3_i32 : i32
    %54 = arith.extui %53 : i1 to i32
    %c0_i32_32 = arith.constant 0 : i32
    %55 = arith.cmpi ne, %54, %c0_i32_32 : i32
    scf.if %55 {
      %c0_33 = arith.constant 0 : index
      %c0_34 = arith.constant 0 : index
      %56 = vector.load %arg18[%c0_33, %c0_34] : memref<128x64xf32, #tpu.memory_space<vmem>>, vector<128x64xf32>
      %cst_35 = arith.constant 5.000000e-01 : f32
      %57 = vector.broadcast %cst_35 : f32 to vector<128x64xf32>
      %58 = arith.mulf %56, %57 : vector<128x64xf32>
      %cst_36 = arith.constant 0.000000e+00 : f32
      %59 = vector.broadcast %cst_36 : f32 to vector<128x64xf32>
      %60 = arith.maximumf %58, %59 : vector<128x64xf32>
      %61 = arith.truncf %60 : vector<128x64xf32> to vector<128x64xbf16>
      %c0_37 = arith.constant 0 : index
      %c0_38 = arith.constant 0 : index
      %62 = vector.load %arg12[%c0_37, %c0_38] : memref<64x64xbf16, #tpu.memory_space<vmem>>, vector<64x64xbf16>
      %cst_39 = arith.constant dense<0.000000e+00> : vector<128x64xf32>
      %63 = tpu.matmul %61, %62, %cst_39 {dimension_numbers = #tpu.dot_dimension_numbers<[1], [0], [0], [1], [0, 0, 1, 1], [], []>} : vector<128x64xbf16>, vector<64x64xbf16>, vector<128x64xf32> -> vector<128x64xf32>
      %c0_40 = arith.constant 0 : index
      %c0_41 = arith.constant 0 : index
      %64 = vector.load %arg13[%c0_40, %c0_41] : memref<1x64xf32, #tpu.memory_space<vmem>>, vector<1x64xf32>
      %65 = vector.broadcast %64 : vector<1x64xf32> to vector<128x64xf32>
      %66 = arith.addf %63, %65 : vector<128x64xf32>
      %cst_42 = arith.constant 0.000000e+00 : f32
      %67 = vector.broadcast %cst_42 : f32 to vector<128x64xf32>
      %68 = arith.maximumf %66, %67 : vector<128x64xf32>
      %69 = arith.truncf %68 : vector<128x64xf32> to vector<128x64xbf16>
      %c0_43 = arith.constant 0 : index
      %c0_44 = arith.constant 0 : index
      %70 = vector.load %arg14[%c0_43, %c0_44] : memref<64x128xbf16, #tpu.memory_space<vmem>>, vector<64x128xbf16>
      %cst_45 = arith.constant dense<0.000000e+00> : vector<128x128xf32>
      %71 = tpu.matmul %69, %70, %cst_45 {dimension_numbers = #tpu.dot_dimension_numbers<[1], [0], [0], [1], [0, 0, 1, 1], [], []>} : vector<128x64xbf16>, vector<64x128xbf16>, vector<128x128xf32> -> vector<128x128xf32>
      %c0_46 = arith.constant 0 : index
      %c0_47 = arith.constant 0 : index
      %72 = vector.load %arg15[%c0_46, %c0_47] : memref<1x128xf32, #tpu.memory_space<vmem>>, vector<1x128xf32>
      %73 = vector.broadcast %72 : vector<1x128xf32> to vector<128x128xf32>
      %74 = arith.addf %71, %73 : vector<128x128xf32>
      %c0_48 = arith.constant 0 : index
      %c0_49 = arith.constant 0 : index
      %c0_50 = arith.constant 0 : index
      %75 = vector.load %arg16[%c0_48, %c0_49, %c0_50] : memref<1x128x128xf32, #tpu.memory_space<vmem>>, vector<1x128x128xf32>
      %76 = vector.shape_cast %75 : vector<1x128x128xf32> to vector<128x128xf32>
      %77 = vector.shape_cast %74 : vector<128x128xf32> to vector<1x128x128xf32>
      tpu.vector_store %arg16[%c0_48, %c0_49, %c0_50], %77 {strides = array<i32>} : memref<1x128x128xf32, #tpu.memory_space<vmem>>, vector<1x128x128xf32>,
    } else {
    }
    return
  }
  func.func @transform_0(%arg0: i32, %arg1: i32, %arg2: memref<4xi32, #tpu.memory_space<smem>>) -> (i32, i32, i32) {
    %c0_i32 = arith.constant 0 : i32
    %c0_i32_0 = arith.constant 0 : i32
    %c0_i32_1 = arith.constant 0 : i32
    return %arg0, %c0_i32, %c0_i32_0 : i32, i32, i32
  }
  func.func @transform_1(%arg0: i32, %arg1: i32, %arg2: memref<4xi32, #tpu.memory_space<smem>>) -> (i32, i32) {
    %c0_i32 = arith.constant 0 : i32
    %c0_i32_0 = arith.constant 0 : i32
    %c0_i32_1 = arith.constant 0 : i32
    return %c0_i32, %c0_i32_0 : i32, i32
  }
  func.func @transform_2(%arg0: i32, %arg1: i32, %arg2: memref<4xi32, #tpu.memory_space<smem>>) -> (i32, i32) {
    %c0_i32 = arith.constant 0 : i32
    %c0_i32_0 = arith.constant 0 : i32
    %c0_i32_1 = arith.constant 0 : i32
    return %c0_i32, %c0_i32_0 : i32, i32
  }
  func.func @transform_3(%arg0: i32, %arg1: i32, %arg2: memref<4xi32, #tpu.memory_space<smem>>) -> (i32, i32, i32) {
    %c0_i32 = arith.constant 0 : i32
    %c0_i32_0 = arith.constant 0 : i32
    %c0_i32_1 = arith.constant 0 : i32
    return %arg1, %c0_i32, %c0_i32_0 : i32, i32, i32
  }
  func.func @transform_4(%arg0: i32, %arg1: i32, %arg2: memref<4xi32, #tpu.memory_space<smem>>) -> (i32, i32, i32) {
    %c0_i32 = arith.constant 0 : i32
    %c0_i32_0 = arith.constant 0 : i32
    %c0_i32_1 = arith.constant 0 : i32
    return %arg1, %c0_i32, %c0_i32_0 : i32, i32, i32
  }
  func.func @transform_5(%arg0: i32, %arg1: i32, %arg2: memref<4xi32, #tpu.memory_space<smem>>) -> (i32, i32, i32) {
    %c0_i32 = arith.constant 0 : i32
    %c0_i32_0 = arith.constant 0 : i32
    %c0_i32_1 = arith.constant 0 : i32
    return %arg1, %c0_i32, %c0_i32_0 : i32, i32, i32
  }
  func.func @transform_6(%arg0: i32, %arg1: i32, %arg2: memref<4xi32, #tpu.memory_space<smem>>) -> (i32, i32, i32) {
    %c0_i32 = arith.constant 0 : i32
    %c0_i32_0 = arith.constant 0 : i32
    %c0_i32_1 = arith.constant 0 : i32
    return %arg1, %c0_i32, %c0_i32_0 : i32, i32, i32
  }
  func.func @transform_7(%arg0: i32, %arg1: i32, %arg2: memref<4xi32, #tpu.memory_space<smem>>) -> (i32, i32, i32) {
    %c0_i32 = arith.constant 0 : i32
    %c0_i32_0 = arith.constant 0 : i32
    %c0_i32_1 = arith.constant 0 : i32
    return %arg1, %c0_i32, %c0_i32_0 : i32, i32, i32
  }
  func.func @transform_8(%arg0: i32, %arg1: i32, %arg2: memref<4xi32, #tpu.memory_space<smem>>) -> (i32, i32, i32) {
    %c0_i32 = arith.constant 0 : i32
    %c0_i32_0 = arith.constant 0 : i32
    %c0_i32_1 = arith.constant 0 : i32
    return %arg1, %c0_i32, %c0_i32_0 : i32, i32, i32
  }
  func.func @transform_9(%arg0: i32, %arg1: i32, %arg2: memref<4xi32, #tpu.memory_space<smem>>) -> (i32, i32) {
    %c0_i32 = arith.constant 0 : i32
    %c0_i32_0 = arith.constant 0 : i32
    %c0_i32_1 = arith.constant 0 : i32
    return %c0_i32, %c0_i32_0 : i32, i32
  }
  func.func @transform_10(%arg0: i32, %arg1: i32, %arg2: memref<4xi32, #tpu.memory_space<smem>>) -> (i32, i32) {
    %c0_i32 = arith.constant 0 : i32
    %c0_i32_0 = arith.constant 0 : i32
    %c0_i32_1 = arith.constant 0 : i32
    return %c0_i32, %c0_i32_0 : i32, i32
  }
  func.func @transform_11(%arg0: i32, %arg1: i32, %arg2: memref<4xi32, #tpu.memory_space<smem>>) -> (i32, i32) {
    %c0_i32 = arith.constant 0 : i32
    %c0_i32_0 = arith.constant 0 : i32
    %c0_i32_1 = arith.constant 0 : i32
    return %c0_i32, %c0_i32_0 : i32, i32
  }
  func.func @transform_12(%arg0: i32, %arg1: i32, %arg2: memref<4xi32, #tpu.memory_space<smem>>) -> (i32, i32) {
    %c0_i32 = arith.constant 0 : i32
    %c0_i32_0 = arith.constant 0 : i32
    %c0_i32_1 = arith.constant 0 : i32
    return %c0_i32, %c0_i32_0 : i32, i32
  }
  func.func @transform_13(%arg0: i32, %arg1: i32, %arg2: memref<4xi32, #tpu.memory_space<smem>>) -> (i32, i32, i32) {
    %c0_i32 = arith.constant 0 : i32
    %c0_i32_0 = arith.constant 0 : i32
    %c0_i32_1 = arith.constant 0 : i32
    return %arg0, %c0_i32, %c0_i32_0 : i32, i32, i32
  }
}

</mosaic_0001>

<llo_original>
// kernel: tpu_custom_call.1
$region0: #{tpu_custom_call.1}
  #allocation0 [shape = 'u32[]', space=smem, size = 0x4, offset = 0x4, fixed_abs, tag = 'smem constant byte address 0x4 - core index']
  #allocation1 [shape = 'u32[144,128]{1,0:T(1,128)}', space=vmem, size = 0x12000, scoped, tag = 'internal scratch']
  #allocation2 [shape = 'f32[136,64]{1,0:T(8,128)}', space=vmem, size = 0x11000, scoped, tag = 'scratch operand']
  #allocation3 [shape = 'f32[128,64]{1,0:T(8,128)}', space=vmem, size = 0x10000, scoped, tag = 'scratch operand']
  #allocation4 [shape = 's32[1]{0}', space=sflag, size = 0x4, scoped, tag = 'scoped memory for tpu_custom_call.1']
  #allocation5 [shape = 'u8[512]{0}', space=smem, size = 0x200, scoped, tag = 'prefetched SMEM operand 0']
  %s0 = inlined_call_operand.hbm [shape: s32[4], index: 0, kind: input, shape index: {}]
  %s1 = inlined_call_operand.vmem [shape: f32[2,128,1], index: 1, kind: input, shape index: {}]
  %s2 = inlined_call_operand.hbm [shape: f32[1,64], index: 2, kind: input, shape index: {}]
  %s3 = inlined_call_operand.hbm [shape: f32[1,64], index: 3, kind: input, shape index: {}]
  %s4 = inlined_call_operand.hbm [shape: bf16[4,192,128], index: 4, kind: input, shape index: {}]
  %s5 = inlined_call_operand.hbm [shape: f32[4,1,128], index: 5, kind: input, shape index: {}]
  %s6 = inlined_call_operand.vmem [shape: bf16[4,64,64], index: 6, kind: input, shape index: {}]
  %s7 = inlined_call_operand.hbm [shape: f32[4,1,64], index: 7, kind: input, shape index: {}]
  %s8 = inlined_call_operand.vmem [shape: bf16[4,64,64], index: 8, kind: input, shape index: {}]
  %s9 = inlined_call_operand.vmem [shape: f32[4,1,64], index: 9, kind: input, shape index: {}]
  %s10 = inlined_call_operand.vmem [shape: bf16[64,64], index: 10, kind: input, shape index: {}]
  %s11 = inlined_call_operand.vmem [shape: f32[1,64], index: 11, kind: input, shape index: {}]
  %s12 = inlined_call_operand.hbm [shape: bf16[64,128], index: 12, kind: input, shape index: {}]
  %s13 = inlined_call_operand.vmem [shape: f32[1,128], index: 13, kind: input, shape index: {}]
  %s14 = inlined_call_operand.hbm [shape: f32[2,128,128], index: 14, kind: output, shape index: {}]
  %s15 = sld [smem:[#allocation0]]
  $region117: #{tpu_custom_call.1} parent=0
    _
  %s17 = ssub.s32 1, %s15
  %s18 = scalar_select 0, %s17, %s15
  %20 = dma.hbm_to_smem %s0, 16, [#allocation5], [#allocation4]
  %21 = dma.done [#allocation4], 16
  %22 = sfence
  $region1: #{tpu_custom_call.1} parent=0
    #allocation6 [shape = 'u8[512]{0}', space=vmem, size = 0x400, scoped, tag = 'input window, operand 2, single buffered']
    #allocation7 [shape = 's32[2]{0}', space=sflag, size = 0x8, scoped, tag = 'scoped memory for tpu_custom_call.1']
    #allocation8 [shape = 's32[2]{0}', space=sflag, size = 0x8, scoped, tag = 'scoped memory for tpu_custom_call.1']
    #allocation9 [shape = 'u8[512]{0}', space=vmem, size = 0x400, scoped, tag = 'input window, operand 3, single buffered']
    #allocation10 [shape = 's32[1]{0}', space=sflag, size = 0x4, scoped, tag = 'scoped memory for tpu_custom_call.1']
    #allocation11 [shape = 'u8[98304]{0}', space=vmem, size = 0x18000, scoped, tag = 'input window, operand 4']
    #allocation12 [shape = 'u8[1024]{0}', space=vmem, size = 0x400, scoped, tag = 'input window, operand 5']
    #allocation13 [shape = 'u8[1024]{0}', space=vmem, size = 0x400, scoped, tag = 'input window, operand 7']
    #allocation14 [shape = 'u8[16384]{0}', space=vmem, size = 0x4000, scoped, tag = 'input window, operand 12, single buffered']
    #allocation15 [shape = 'u8[131072]{0}', space=vmem, size = 0x20000, scoped, tag = 'output window, operand 0']
    %23 = vsyncpa [#allocation7], 0
    %24 = vsyncpa [#allocation10], 0
    %25 = vsyncpa [#allocation8], 0
    %s26 = scalar_lea.sflag [#allocation8], 1
    %27 = vsyncpa %s26, 0
    loop: start=0, step=1, limit=10
    $region2: #{tpu_custom_call.1} parent=1 // loop_pre_header
      _
    $region3: #{tpu_custom_call.1} parent=1 // loop_header
      %s29 = sphi 0, %s33
      %p30 = scmp.ge.s32.totalorder %s29, 10
      %s36 = sphi 0, %s48
      %s37 = sphi 0, %s44
      %s38 = sphi 0, %s36
      %s39 = sphi 0, %s37
      %s40 = sphi 0, %s38
      %s41 = sphi 0, %s39
      %s51 = sphi 0, %s53
      %s54 = sphi 0, %s51
      %s55 = sphi 0, %s54
      %s71 = sphi 0, %s55
      %s75 = sphi 0, %s75
      %s77 = sphi 0, %s75
      %s78 = sphi 0, %s77
      %s92 = sphi 0, %s78
      %s96 = sphi 0, %s96
      %s98 = sphi 0, %s96
      %s99 = sphi 0, %s98
      %s113 = sphi 0, %s99
      %s119 = sphi 0, %s121
      %s122 = sphi 0, %s119
      %s123 = sphi 0, %s122
      %s139 = sphi 0, %s123
      %s145 = sphi 0, %s147
      %s148 = sphi 0, %s145
      %s149 = sphi 0, %s148
      %s165 = sphi 0, %s149
      %s171 = sphi 0, %s173
      %s174 = sphi 0, %s171
      %s175 = sphi 0, %s174
      %s191 = sphi 0, %s175
      %s197 = sphi 0, %s199
      %s200 = sphi 0, %s197
      %s201 = sphi 0, %s200
      %s217 = sphi 0, %s201
      %s223 = sphi 0, %s225
      %s226 = sphi 0, %s223
      %s227 = sphi 0, %s226
      %s243 = sphi 0, %s227
      %s249 = sphi 0, %s251
      %s252 = sphi 0, %s249
      %s253 = sphi 0, %s252
      %s269 = sphi 0, %s253
      %s273 = sphi 0, %s273
      %s275 = sphi 0, %s273
      %s276 = sphi 0, %s275
      %s290 = sphi 0, %s276
      %s294 = sphi 0, %s294
      %s296 = sphi 0, %s294
      %s297 = sphi 0, %s296
      %s311 = sphi 0, %s297
      %s315 = sphi 0, %s315
      %s317 = sphi 0, %s315
      %s318 = sphi 0, %s317
      %s332 = sphi 0, %s318
      %s336 = sphi 0, %s336
      %s338 = sphi 0, %s336
      %s339 = sphi 0, %s338
      %s353 = sphi 0, %s339
      %s359 = sphi 0, %s361
      %s362 = sphi 0, %s359
      %s363 = sphi 0, %s362
      %s379 = sphi 0, %s363
    $region4: #{tpu_custom_call.1} parent=1 // loop_header_branch
      %32 = sbr.rel (%p30) target = $region8
    $region5: #{tpu_custom_call.1} parent=1 // loop_body
      %s34 = ssub.s32 %s29, 1
      %s35 = ssub.s32 %s29, 2
      %s42 = sadd.s32 1, %s37
      %p43 = scmp.ge.s32.totalorder %s42, 4
      %s44 = scalar_select %p43, 0, %s42
      %s45 = sadd.s32 1, %s36
      %s46 = scalar_select %p43, %s45, %s36
      %p47 = scmp.ge.s32.totalorder %s46, 2
      %s48 = scalar_select %p47, 0, %s46
      %s49 = ssub.s32 %s36, %s48
      %p50 = scmp.eq.s32.totalorder %s49, 0
      %s52 = sadd.s32 %s51, 1
      %s53 = scalar_select %p50, %s51, %s52
      %p56 = pneg %p50
      %p57 = scmp.eq.s32.totalorder %s29, 7
      %p58 = por %p56, %p57
      %p59 = scmp.ne.s32.totalorder %s51, %s54
      %p60 = scmp.eq.s32.totalorder %s29, 0
      %p61 = por %p59, %p60
      %p62 = scmp.ne.s32.totalorder %s51, %s54
      %p63 = scmp.eq.s32.totalorder %s34, 7
      %p64 = por %p62, %p63
      %p65 = scmp.ne.s32.totalorder %s54, %s55
      %p66 = scmp.eq.s32.totalorder %s34, 0
      %p67 = por %p65, %p66
      %p68 = scmp.ne.s32.totalorder %s54, %s55
      %p69 = scmp.eq.s32.totalorder %s35, 7
      %p70 = por %p68, %p69
      %p72 = scmp.ne.s32.totalorder %s55, %s71
      %p73 = scmp.eq.s32.totalorder %s35, 0
      %p74 = por %p72, %p73
      %s76 = sadd.s32 %s75, 1
      %p79 = scmp.eq.s32.totalorder %s29, 7
      %p80 = scmp.ne.s32.totalorder %s75, %s77
      %p81 = scmp.eq.s32.totalorder %s29, 0
      %p82 = por %p80, %p81
      %p83 = scmp.ne.s32.totalorder %s75, %s77
      %p84 = scmp.eq.s32.totalorder %s34, 7
      %p85 = por %p83, %p84
      %p86 = scmp.ne.s32.totalorder %s77, %s78
      %p87 = scmp.eq.s32.totalorder %s34, 0
      %p88 = por %p86, %p87
      %p89 = scmp.ne.s32.totalorder %s77, %s78
      %p90 = scmp.eq.s32.totalorder %s35, 7
      %p91 = por %p89, %p90
      %p93 = scmp.ne.s32.totalorder %s78, %s92
      %p94 = scmp.eq.s32.totalorder %s35, 0
      %p95 = por %p93, %p94
      %s97 = sadd.s32 %s96, 1
      %p100 = scmp.eq.s32.totalorder %s29, 7
      %p101 = scmp.ne.s32.totalorder %s96, %s98
      %p102 = scmp.eq.s32.totalorder %s29, 0
      %p103 = por %p101, %p102
      %p104 = scmp.ne.s32.totalorder %s96, %s98
      %p105 = scmp.eq.s32.totalorder %s34, 7
      %p106 = por %p104, %p105
      %p107 = scmp.ne.s32.totalorder %s98, %s99
      %p108 = scmp.eq.s32.totalorder %s34, 0
      %p109 = por %p107, %p108
      %p110 = scmp.ne.s32.totalorder %s98, %s99
      %p111 = scmp.eq.s32.totalorder %s35, 7
      %p112 = por %p110, %p111
      %p114 = scmp.ne.s32.totalorder %s99, %s113
      %p115 = scmp.eq.s32.totalorder %s35, 0
      %p116 = por %p114, %p115
      %s117 = ssub.s32 %s37, %s44
      %p118 = scmp.eq.s32.totalorder %s117, 0
      %s120 = sadd.s32 %s119, 1
      %s121 = scalar_select %p118, %s119, %s120
      %p124 = pneg %p118
      %p125 = scmp.eq.s32.totalorder %s29, 7
      %p126 = por %p124, %p125
      %p127 = scmp.ne.s32.totalorder %s119, %s122
      %p128 = scmp.eq.s32.totalorder %s29, 0
      %p129 = por %p127, %p128
      %p130 = scmp.ne.s32.totalorder %s119, %s122
      %p131 = scmp.eq.s32.totalorder %s34, 7
      %p132 = por %p130, %p131
      %p133 = scmp.ne.s32.totalorder %s122, %s123
      %p134 = scmp.eq.s32.totalorder %s34, 0
      %p135 = por %p133, %p134
      %p136 = scmp.ne.s32.totalorder %s122, %s123
      %p137 = scmp.eq.s32.totalorder %s35, 7
      %p138 = por %p136, %p137
      %p140 = scmp.ne.s32.totalorder %s123, %s139
      %p141 = scmp.eq.s32.totalorder %s35, 0
      %p142 = por %p140, %p141
      %s143 = ssub.s32 %s37, %s44
      %p144 = scmp.eq.s32.totalorder %s143, 0
      %s146 = sadd.s32 %s145, 1
      %s147 = scalar_select %p144, %s145, %s146
      %p150 = pneg %p144
      %p151 = scmp.eq.s32.totalorder %s29, 7
      %p152 = por %p150, %p151
      %p153 = scmp.ne.s32.totalorder %s145, %s148
      %p154 = scmp.eq.s32.totalorder %s29, 0
      %p155 = por %p153, %p154
      %p156 = scmp.ne.s32.totalorder %s145, %s148
      %p157 = scmp.eq.s32.totalorder %s34, 7
      %p158 = por %p156, %p157
      %p159 = scmp.ne.s32.totalorder %s148, %s149
      %p160 = scmp.eq.s32.totalorder %s34, 0
      %p161 = por %p159, %p160
      %p162 = scmp.ne.s32.totalorder %s148, %s149
      %p163 = scmp.eq.s32.totalorder %s35, 7
      %p164 = por %p162, %p163
      %p166 = scmp.ne.s32.totalorder %s149, %s165
      %p167 = scmp.eq.s32.totalorder %s35, 0
      %p168 = por %p166, %p167
      %s169 = ssub.s32 %s37, %s44
      %p170 = scmp.eq.s32.totalorder %s169, 0
      %s172 = sadd.s32 %s171, 1
      %s173 = scalar_select %p170, %s171, %s172
      %p176 = pneg %p170
      %p177 = scmp.eq.s32.totalorder %s29, 7
      %p178 = por %p176, %p177
      %p179 = scmp.ne.s32.totalorder %s171, %s174
      %p180 = scmp.eq.s32.totalorder %s29, 0
      %p181 = por %p179, %p180
      %p182 = scmp.ne.s32.totalorder %s171, %s174
      %p183 = scmp.eq.s32.totalorder %s34, 7
      %p184 = por %p182, %p183
      %p185 = scmp.ne.s32.totalorder %s174, %s175
      %p186 = scmp.eq.s32.totalorder %s34, 0
      %p187 = por %p185, %p186
      %p188 = scmp.ne.s32.totalorder %s174, %s175
      %p189 = scmp.eq.s32.totalorder %s35, 7
      %p190 = por %p188, %p189
      %p192 = scmp.ne.s32.totalorder %s175, %s191
      %p193 = scmp.eq.s32.totalorder %s35, 0
      %p194 = por %p192, %p193
      %s195 = ssub.s32 %s37, %s44
      %p196 = scmp.eq.s32.totalorder %s195, 0
      %s198 = sadd.s32 %s197, 1
      %s199 = scalar_select %p196, %s197, %s198
      %p202 = pneg %p196
      %p203 = scmp.eq.s32.totalorder %s29, 7
      %p204 = por %p202, %p203
      %p205 = scmp.ne.s32.totalorder %s197, %s200
      %p206 = scmp.eq.s32.totalorder %s29, 0
      %p207 = por %p205, %p206
      %p208 = scmp.ne.s32.totalorder %s197, %s200
      %p209 = scmp.eq.s32.totalorder %s34, 7
      %p210 = por %p208, %p209
      %p211 = scmp.ne.s32.totalorder %s200, %s201
      %p212 = scmp.eq.s32.totalorder %s34, 0
      %p213 = por %p211, %p212
      %p214 = scmp.ne.s32.totalorder %s200, %s201
      %p215 = scmp.eq.s32.totalorder %s35, 7
      %p216 = por %p214, %p215
      %p218 = scmp.ne.s32.totalorder %s201, %s217
      %p219 = scmp.eq.s32.totalorder %s35, 0
      %p220 = por %p218, %p219
      %s221 = ssub.s32 %s37, %s44
      %p222 = scmp.eq.s32.totalorder %s221, 0
      %s224 = sadd.s32 %s223, 1
      %s225 = scalar_select %p222, %s223, %s224
      %p228 = pneg %p222
      %p229 = scmp.eq.s32.totalorder %s29, 7
      %p230 = por %p228, %p229
      %p231 = scmp.ne.s32.totalorder %s223, %s226
      %p232 = scmp.eq.s32.totalorder %s29, 0
      %p233 = por %p231, %p232
      %p234 = scmp.ne.s32.totalorder %s223, %s226
      %p235 = scmp.eq.s32.totalorder %s34, 7
      %p236 = por %p234, %p235
      %p237 = scmp.ne.s32.totalorder %s226, %s227
      %p238 = scmp.eq.s32.totalorder %s34, 0
      %p239 = por %p237, %p238
      %p240 = scmp.ne.s32.totalorder %s226, %s227
      %p241 = scmp.eq.s32.totalorder %s35, 7
      %p242 = por %p240, %p241
      %p244 = scmp.ne.s32.totalorder %s227, %s243
      %p245 = scmp.eq.s32.totalorder %s35, 0
      %p246 = por %p244, %p245
      %s247 = ssub.s32 %s37, %s44
      %p248 = scmp.eq.s32.totalorder %s247, 0
      %s250 = sadd.s32 %s249, 1
      %s251 = scalar_select %p248, %s249, %s250
      %p254 = pneg %p248
      %p255 = scmp.eq.s32.totalorder %s29, 7
      %p256 = por %p254, %p255
      %p257 = scmp.ne.s32.totalorder %s249, %s252
      %p258 = scmp.eq.s32.totalorder %s29, 0
      %p259 = por %p257, %p258
      %p260 = scmp.ne.s32.totalorder %s249, %s252
      %p261 = scmp.eq.s32.totalorder %s34, 7
      %p262 = por %p260, %p261
      %p263 = scmp.ne.s32.totalorder %s252, %s253
      %p264 = scmp.eq.s32.totalorder %s34, 0
      %p265 = por %p263, %p264
      %p266 = scmp.ne.s32.totalorder %s252, %s253
      %p267 = scmp.eq.s32.totalorder %s35, 7
      %p268 = por %p266, %p267
      %p270 = scmp.ne.s32.totalorder %s253, %s269
      %p271 = scmp.eq.s32.totalorder %s35, 0
      %p272 = por %p270, %p271
      %s274 = sadd.s32 %s273, 1
      %p277 = scmp.eq.s32.totalorder %s29, 7
      %p278 = scmp.ne.s32.totalorder %s273, %s275
      %p279 = scmp.eq.s32.totalorder %s29, 0
      %p280 = por %p278, %p279
      %p281 = scmp.ne.s32.totalorder %s273, %s275
      %p282 = scmp.eq.s32.totalorder %s34, 7
      %p283 = por %p281, %p282
      %p284 = scmp.ne.s32.totalorder %s275, %s276
      %p285 = scmp.eq.s32.totalorder %s34, 0
      %p286 = por %p284, %p285
      %p287 = scmp.ne.s32.totalorder %s275, %s276
      %p288 = scmp.eq.s32.totalorder %s35, 7
      %p289 = por %p287, %p288
      %p291 = scmp.ne.s32.totalorder %s276, %s290
      %p292 = scmp.eq.s32.totalorder %s35, 0
      %p293 = por %p291, %p292
      %s295 = sadd.s32 %s294, 1
      %p298 = scmp.eq.s32.totalorder %s29, 7
      %p299 = scmp.ne.s32.totalorder %s294, %s296
      %p300 = scmp.eq.s32.totalorder %s29, 0
      %p301 = por %p299, %p300
      %p302 = scmp.ne.s32.totalorder %s294, %s296
      %p303 = scmp.eq.s32.totalorder %s34, 7
      %p304 = por %p302, %p303
      %p305 = scmp.ne.s32.totalorder %s296, %s297
      %p306 = scmp.eq.s32.totalorder %s34, 0
      %p307 = por %p305, %p306
      %p308 = scmp.ne.s32.totalorder %s296, %s297
      %p309 = scmp.eq.s32.totalorder %s35, 7
      %p310 = por %p308, %p309
      %p312 = scmp.ne.s32.totalorder %s297, %s311
      %p313 = scmp.eq.s32.totalorder %s35, 0
      %p314 = por %p312, %p313
      %s316 = sadd.s32 %s315, 1
      %p319 = scmp.eq.s32.totalorder %s29, 7
      %p320 = scmp.ne.s32.totalorder %s315, %s317
      %p321 = scmp.eq.s32.totalorder %s29, 0
      %p322 = por %p320, %p321
      %p323 = scmp.ne.s32.totalorder %s315, %s317
      %p324 = scmp.eq.s32.totalorder %s34, 7
      %p325 = por %p323, %p324
      %p326 = scmp.ne.s32.totalorder %s317, %s318
      %p327 = scmp.eq.s32.totalorder %s34, 0
      %p328 = por %p326, %p327
      %p329 = scmp.ne.s32.totalorder %s317, %s318
      %p330 = scmp.eq.s32.totalorder %s35, 7
      %p331 = por %p329, %p330
      %p333 = scmp.ne.s32.totalorder %s318, %s332
      %p334 = scmp.eq.s32.totalorder %s35, 0
      %p335 = por %p333, %p334
      %s337 = sadd.s32 %s336, 1
      %p340 = scmp.eq.s32.totalorder %s29, 7
      %p341 = scmp.ne.s32.totalorder %s336, %s338
      %p342 = scmp.eq.s32.totalorder %s29, 0
      %p343 = por %p341, %p342
      %p344 = scmp.ne.s32.totalorder %s336, %s338
      %p345 = scmp.eq.s32.totalorder %s34, 7
      %p346 = por %p344, %p345
      %p347 = scmp.ne.s32.totalorder %s338, %s339
      %p348 = scmp.eq.s32.totalorder %s34, 0
      %p349 = por %p347, %p348
      %p350 = scmp.ne.s32.totalorder %s338, %s339
      %p351 = scmp.eq.s32.totalorder %s35, 7
      %p352 = por %p350, %p351
      %p354 = scmp.ne.s32.totalorder %s339, %s353
      %p355 = scmp.eq.s32.totalorder %s35, 0
      %p356 = por %p354, %p355
      %s357 = ssub.s32 %s36, %s48
      %p358 = scmp.eq.s32.totalorder %s357, 0
      %s360 = sadd.s32 %s359, 1
      %s361 = scalar_select %p358, %s359, %s360
      %p364 = pneg %p358
      %p365 = scmp.eq.s32.totalorder %s29, 7
      %p366 = por %p364, %p365
      %p367 = scmp.ne.s32.totalorder %s359, %s362
      %p368 = scmp.eq.s32.totalorder %s29, 0
      %p369 = por %p367, %p368
      %p370 = scmp.ne.s32.totalorder %s359, %s362
      %p371 = scmp.eq.s32.totalorder %s34, 7
      %p372 = por %p370, %p371
      %p373 = scmp.ne.s32.totalorder %s362, %s363
      %p374 = scmp.eq.s32.totalorder %s34, 0
      %p375 = por %p373, %p374
      %p376 = scmp.ne.s32.totalorder %s362, %s363
      %p377 = scmp.eq.s32.totalorder %s35, 7
      %p378 = por %p376, %p377
      %p380 = scmp.ne.s32.totalorder %s363, %s379
      %p381 = scmp.eq.s32.totalorder %s35, 0
      %p382 = por %p380, %p381
      %p383 = scmp.le.s32.totalorder 1, %s29
      %p384 = scmp.lt.s32.totalorder %s29, 9
      %p385 = pnand %p383, %p384
      %p386 = pneg %p385
      // Predicated region
      $region9: #{tpu_custom_call.1} parent=5 // pred_check
        _
      $region10: #{tpu_custom_call.1} parent=5 // pred_check_branch
        %388 = sbr.rel (%p385) target = $region12
      $region11: #{tpu_custom_call.1} parent=5 // pred_region
        %s389 = ssub.s32 %s29, 1
        // Predicated region
        $region13: #{tpu_custom_call.1} parent=11 // pred_check
          %p390 = pneg %p88
        $region14: #{tpu_custom_call.1} parent=11 // pred_check_branch
          %392 = sbr.rel (%p390) target = $region16
        $region15: #{tpu_custom_call.1} parent=11 // pred_region
          %s394 = ssub.s32 16, 16
          %395 = vsyncadd [#allocation7], %s394
          %s397 = sshll.u32 [#allocation6], 4
          %s398 = int_to_ptr.vmem [resolvable:$true] %s397
          %400 = dma.hbm_to_vmem [thread:$0]  %s2, 16, %s398, [#allocation7]
        $region16: #{tpu_custom_call.1} parent=11 // pred_fallthru
          _
        // Predicated region
        $region17: #{tpu_custom_call.1} parent=11 // pred_check
          %p401 = pneg %p109
        $region18: #{tpu_custom_call.1} parent=11 // pred_check_branch
          %403 = sbr.rel (%p401) target = $region20
        $region19: #{tpu_custom_call.1} parent=11 // pred_region
          %s405 = ssub.s32 16, 16
          %406 = vsyncadd [#allocation10], %s405
          %s408 = sshll.u32 [#allocation9], 4
          %s409 = int_to_ptr.vmem [resolvable:$true] %s408
          %411 = dma.hbm_to_vmem [thread:$0]  %s3, 16, %s409, [#allocation10]
        $region20: #{tpu_custom_call.1} parent=11 // pred_fallthru
          _
        // Predicated region
        $region21: #{tpu_custom_call.1} parent=11 // pred_check
          %p412 = pneg %p286
        $region22: #{tpu_custom_call.1} parent=11 // pred_check_branch
          %414 = sbr.rel (%p412) target = $region24
        $region23: #{tpu_custom_call.1} parent=11 // pred_region
          _
        $region24: #{tpu_custom_call.1} parent=11 // pred_fallthru
          _
        // Predicated region
        $region25: #{tpu_custom_call.1} parent=11 // pred_check
          %p415 = pneg %p307
        $region26: #{tpu_custom_call.1} parent=11 // pred_check_branch
          %417 = sbr.rel (%p415) target = $region28
        $region27: #{tpu_custom_call.1} parent=11 // pred_region
          _
        $region28: #{tpu_custom_call.1} parent=11 // pred_fallthru
          _
        // Predicated region
        $region29: #{tpu_custom_call.1} parent=11 // pred_check
          %p418 = pneg %p328
        $region30: #{tpu_custom_call.1} parent=11 // pred_check_branch
          %420 = sbr.rel (%p418) target = $region32
        $region31: #{tpu_custom_call.1} parent=11 // pred_region
          %s422 = ssub.s32 512, 512
          %423 = vsyncadd [#allocation10], %s422
          %s424 = sshll.u32 [#allocation14], 4
          %s425 = int_to_ptr.vmem [resolvable:$true] %s424
          %430 = dma.hbm_to_vmem [thread:$0]  %s12, 512, %s425, [#allocation10], 64, 64, 4
        $region32: #{tpu_custom_call.1} parent=11 // pred_fallthru
          _
        // Predicated region
        $region33: #{tpu_custom_call.1} parent=11 // pred_check
          %p431 = pneg %p349
        $region34: #{tpu_custom_call.1} parent=11 // pred_check_branch
          %433 = sbr.rel (%p431) target = $region36
        $region35: #{tpu_custom_call.1} parent=11 // pred_region
          _
        $region36: #{tpu_custom_call.1} parent=11 // pred_fallthru
          _
      $region12: #{tpu_custom_call.1} parent=5 // pred_fallthru
        _
      %p434 = scmp.lt.s32.totalorder %s29, 8
      // Predicated region
      $region37: #{tpu_custom_call.1} parent=5 // pred_check
        %p435 = pneg %p434
      $region38: #{tpu_custom_call.1} parent=5 // pred_check_branch
        %437 = sbr.rel (%p435) target = $region40
      $region39: #{tpu_custom_call.1} parent=5 // pred_region
        // Predicated region
        $region41: #{tpu_custom_call.1} parent=39 // pred_check
          %p438 = pneg %p61
        $region42: #{tpu_custom_call.1} parent=39 // pred_check_branch
          %440 = sbr.rel (%p438) target = $region44
        $region43: #{tpu_custom_call.1} parent=39 // pred_region
          %p441 = scmp.lt.s32.totalorder %s36, 1
          %s442 = scalar_select %p441, %s36, 1
          %s443 = smul.addr %s442, 16
          %s444 = smul.addr %s443, 8
          %s445 = scalar_lea.vmem %s1, %s444
        $region44: #{tpu_custom_call.1} parent=39 // pred_fallthru
          _
        // Predicated region
        $region45: #{tpu_custom_call.1} parent=39 // pred_check
          %p446 = pneg %p129
        $region46: #{tpu_custom_call.1} parent=39 // pred_check_branch
          %448 = sbr.rel (%p446) target = $region48
        $region47: #{tpu_custom_call.1} parent=39 // pred_region
          %s449 = sand.u32 %s29, 1
          %s450 = scalar_lea.sflag [#allocation7], %s449
          %s451 = sand.u32 %s119, 1
          %s452 = smul.addr %s451, 96
          %s453 = scalar_lea.vmem [#allocation11], %s452
          %s455 = ssub.s32 1536, 1536
          %456 = vsyncadd %s450, %s455
          %s457 = smul.addr %s37, 24
          %s458 = smul.addr %s457, 64
          %s459 = scalar_lea.hbm %s4, %s458
          %s460 = sshll.u32 %s453, 4
          %s461 = int_to_ptr.vmem [resolvable:$true] %s460
          %466 = dma.hbm_to_vmem [thread:$0]  %s459, 1536, %s461, %s450, 64, 64, 4
        $region48: #{tpu_custom_call.1} parent=39 // pred_fallthru
          _
        // Predicated region
        $region49: #{tpu_custom_call.1} parent=39 // pred_check
          %p467 = pneg %p155
        $region50: #{tpu_custom_call.1} parent=39 // pred_check_branch
          %469 = sbr.rel (%p467) target = $region52
        $region51: #{tpu_custom_call.1} parent=39 // pred_region
          %s470 = sand.u32 %s29, 1
          %s471 = scalar_lea.sflag [#allocation7], %s470
          %s472 = sand.u32 %s145, 1
          %s473 = scalar_lea.vmem [#allocation12], %s472
          %s475 = ssub.s32 16, 16
          %476 = vsyncadd %s471, %s475
          %s477 = smul.addr %s37, 16
          %s478 = scalar_lea.hbm %s5, %s477
          %s480 = sshll.u32 %s473, 4
          %s481 = int_to_ptr.vmem [resolvable:$true] %s480
          %483 = dma.hbm_to_vmem [thread:$0]  %s478, 16, %s481, %s471
        $region52: #{tpu_custom_call.1} parent=39 // pred_fallthru
          _
        // Predicated region
        $region53: #{tpu_custom_call.1} parent=39 // pred_check
          %p484 = pneg %p181
        $region54: #{tpu_custom_call.1} parent=39 // pred_check_branch
          %486 = sbr.rel (%p484) target = $region56
        $region55: #{tpu_custom_call.1} parent=39 // pred_region
          %p487 = scmp.lt.s32.totalorder %s37, 3
          %s488 = scalar_select %p487, %s37, 3
          %s489 = smul.addr %s488, 8
          %s490 = smul.addr %s489, 4
          %s491 = scalar_lea.vmem %s6, %s490
        $region56: #{tpu_custom_call.1} parent=39 // pred_fallthru
          _
        // Predicated region
        $region57: #{tpu_custom_call.1} parent=39 // pred_check
          %p492 = pneg %p207
        $region58: #{tpu_custom_call.1} parent=39 // pred_check_branch
          %494 = sbr.rel (%p492) target = $region60
        $region59: #{tpu_custom_call.1} parent=39 // pred_region
          %s495 = sand.u32 %s29, 1
          %s496 = scalar_lea.sflag [#allocation7], %s495
          %s497 = sand.u32 %s197, 1
          %s498 = scalar_lea.vmem [#allocation13], %s497
          %s500 = ssub.s32 16, 16
          %501 = vsyncadd %s496, %s500
          %s502 = smul.addr %s37, 16
          %s503 = scalar_lea.hbm %s7, %s502
          %s505 = sshll.u32 %s498, 4
          %s506 = int_to_ptr.vmem [resolvable:$true] %s505
          %508 = dma.hbm_to_vmem [thread:$0]  %s503, 16, %s506, %s496
        $region60: #{tpu_custom_call.1} parent=39 // pred_fallthru
          _
        // Predicated region
        $region61: #{tpu_custom_call.1} parent=39 // pred_check
          %p509 = pneg %p233
        $region62: #{tpu_custom_call.1} parent=39 // pred_check_branch
          %511 = sbr.rel (%p509) target = $region64
        $region63: #{tpu_custom_call.1} parent=39 // pred_region
          %p512 = scmp.lt.s32.totalorder %s37, 3
          %s513 = scalar_select %p512, %s37, 3
          %s514 = smul.addr %s513, 8
          %s515 = smul.addr %s514, 4
          %s516 = scalar_lea.vmem %s8, %s515
        $region64: #{tpu_custom_call.1} parent=39 // pred_fallthru
          _
        // Predicated region
        $region65: #{tpu_custom_call.1} parent=39 // pred_check
          %p517 = pneg %p259
        $region66: #{tpu_custom_call.1} parent=39 // pred_check_branch
          %519 = sbr.rel (%p517) target = $region68
        $region67: #{tpu_custom_call.1} parent=39 // pred_region
          %p520 = scmp.lt.s32.totalorder %s37, 3
          %s521 = scalar_select %p520, %s37, 3
          %s522 = scalar_lea.vmem %s9, %s521
        $region68: #{tpu_custom_call.1} parent=39 // pred_fallthru
          _
      $region40: #{tpu_custom_call.1} parent=5 // pred_fallthru
        _
      %p523 = scmp.le.s32.totalorder 1, %s29
      %p524 = scmp.lt.s32.totalorder %s29, 9
      %p525 = pnand %p523, %p524
      %p526 = pneg %p525
      // Predicated region
      $region69: #{tpu_custom_call.1} parent=5 // pred_check
        _
      $region70: #{tpu_custom_call.1} parent=5 // pred_check_branch
        %528 = sbr.rel (%p525) target = $region72
      $region71: #{tpu_custom_call.1} parent=5 // pred_region
        %s529 = ssub.s32 %s29, 1
        // Predicated region
        $region73: #{tpu_custom_call.1} parent=71 // pred_check
          %p530 = pneg %p88
        $region74: #{tpu_custom_call.1} parent=71 // pred_check_branch
          %532 = sbr.rel (%p530) target = $region76
        $region75: #{tpu_custom_call.1} parent=71 // pred_region
          %533 = dma.done [#allocation7], 16
        $region76: #{tpu_custom_call.1} parent=71 // pred_fallthru
          _
        // Predicated region
        $region77: #{tpu_custom_call.1} parent=71 // pred_check
          %p534 = pneg %p109
        $region78: #{tpu_custom_call.1} parent=71 // pred_check_branch
          %536 = sbr.rel (%p534) target = $region80
        $region79: #{tpu_custom_call.1} parent=71 // pred_region
          %537 = dma.done [#allocation10], 16
        $region80: #{tpu_custom_call.1} parent=71 // pred_fallthru
          _
        %s538 = sand.u32 %s34, 1
        %s539 = scalar_lea.sflag [#allocation7], %s538
        %s540 = sand.u32 %s122, 1
        %s541 = smul.addr %s540, 96
        %s542 = scalar_lea.vmem [#allocation11], %s541
        // Predicated region
        $region81: #{tpu_custom_call.1} parent=71 // pred_check
          %p543 = pneg %p135
        $region82: #{tpu_custom_call.1} parent=71 // pred_check_branch
          %545 = sbr.rel (%p543) target = $region84
        $region83: #{tpu_custom_call.1} parent=71 // pred_region
          %546 = dma.done %s539, 1536
        $region84: #{tpu_custom_call.1} parent=71 // pred_fallthru
          _
        %s547 = sand.u32 %s34, 1
        %s548 = scalar_lea.sflag [#allocation7], %s547
        %s549 = sand.u32 %s148, 1
        %s550 = scalar_lea.vmem [#allocation12], %s549
        // Predicated region
        $region85: #{tpu_custom_call.1} parent=71 // pred_check
          %p551 = pneg %p161
        $region86: #{tpu_custom_call.1} parent=71 // pred_check_branch
          %553 = sbr.rel (%p551) target = $region88
        $region87: #{tpu_custom_call.1} parent=71 // pred_region
          %554 = dma.done %s548, 16
        $region88: #{tpu_custom_call.1} parent=71 // pred_fallthru
          _
        %s555 = sand.u32 %s34, 1
        %s556 = scalar_lea.sflag [#allocation7], %s555
        %s557 = sand.u32 %s200, 1
        %s558 = scalar_lea.vmem [#allocation13], %s557
        // Predicated region
        $region89: #{tpu_custom_call.1} parent=71 // pred_check
          %p559 = pneg %p213
        $region90: #{tpu_custom_call.1} parent=71 // pred_check_branch
          %561 = sbr.rel (%p559) target = $region92
        $region91: #{tpu_custom_call.1} parent=71 // pred_region
          %562 = dma.done %s556, 16
        $region92: #{tpu_custom_call.1} parent=71 // pred_fallthru
          _
        // Predicated region
        $region93: #{tpu_custom_call.1} parent=71 // pred_check
          %p563 = pneg %p328
        $region94: #{tpu_custom_call.1} parent=71 // pred_check_branch
          %565 = sbr.rel (%p563) target = $region96
        $region95: #{tpu_custom_call.1} parent=71 // pred_region
          %566 = dma.done [#allocation10], 512
        $region96: #{tpu_custom_call.1} parent=71 // pred_fallthru
          _
        %p567 = scmp.lt.s32.totalorder %s38, 1
        %s568 = scalar_select %p567, %s38, 1
        %s569 = smul.addr %s568, 16
        %s570 = smul.addr %s569, 8
        %s571 = scalar_lea.vmem %s1, %s570
        %p572 = pneg %p67
        %p573 = pneg %p64
        %p574 = pneg %p88
        %p575 = pneg %p85
        %p576 = pneg %p109
        %p577 = pneg %p106
        %s578 = sand.u32 %s34, 1
        %s579 = scalar_lea.sflag [#allocation7], %s578
        %s580 = sand.u32 %s122, 1
        %s581 = smul.addr %s580, 96
        %s582 = scalar_lea.vmem [#allocation11], %s581
        %p583 = pneg %p135
        %p584 = pneg %p132
        %s585 = sand.u32 %s34, 1
        %s586 = scalar_lea.sflag [#allocation7], %s585
        %s587 = sand.u32 %s148, 1
        %s588 = scalar_lea.vmem [#allocation12], %s587
        %p589 = pneg %p161
        %p590 = pneg %p158
        %p591 = scmp.lt.s32.totalorder %s39, 3
        %s592 = scalar_select %p591, %s39, 3
        %s593 = smul.addr %s592, 8
        %s594 = smul.addr %s593, 4
        %s595 = scalar_lea.vmem %s6, %s594
        %p596 = pneg %p187
        %p597 = pneg %p184
        %s598 = sand.u32 %s34, 1
        %s599 = scalar_lea.sflag [#allocation7], %s598
        %s600 = sand.u32 %s200, 1
        %s601 = scalar_lea.vmem [#allocation13], %s600
        %p602 = pneg %p213
        %p603 = pneg %p210
        %p604 = scmp.lt.s32.totalorder %s39, 3
        %s605 = scalar_select %p604, %s39, 3
        %s606 = smul.addr %s605, 8
        %s607 = smul.addr %s606, 4
        %s608 = scalar_lea.vmem %s8, %s607
        %p609 = pneg %p239
        %p610 = pneg %p236
        %p611 = scmp.lt.s32.totalorder %s39, 3
        %s612 = scalar_select %p611, %s39, 3
        %s613 = scalar_lea.vmem %s9, %s612
        %p614 = pneg %p265
        %p615 = pneg %p262
        %p616 = pneg %p286
        %p617 = pneg %p283
        %p618 = pneg %p307
        %p619 = pneg %p304
        %p620 = pneg %p328
        %p621 = pneg %p325
        %p622 = pneg %p349
        %p623 = pneg %p346
        %p624 = pneg %p375
        %p625 = pneg %p372
        %s626 = sand.u32 %s362, 1
        %s627 = scalar_lea.sflag [#allocation8], %s626
        %s628 = sand.u32 %s362, 1
        %s629 = smul.addr %s628, 128
        %s630 = scalar_lea.vmem [#allocation15], %s629
        %p631 = scmp.lt.s32.totalorder %s38, 1
        %s632 = scalar_select %p631, %s38, 1
        %s633 = smul.addr %s632, 16
        %s634 = smul.addr %s633, 8
        %s635 = scalar_lea.vmem %s1, %s634
        %p636 = scmp.lt.s32.totalorder %s39, 3
        %s637 = scalar_select %p636, %s39, 3
        %s638 = smul.addr %s637, 8
        %s639 = smul.addr %s638, 4
        %s640 = scalar_lea.vmem %s6, %s639
        %p641 = scmp.lt.s32.totalorder %s39, 3
        %s642 = scalar_select %p641, %s39, 3
        %s643 = smul.addr %s642, 8
        %s644 = smul.addr %s643, 4
        %s645 = scalar_lea.vmem %s8, %s644
        %p646 = scmp.lt.s32.totalorder %s39, 3
        %s647 = scalar_select %p646, %s39, 3
        %s648 = scalar_lea.vmem %s9, %s647
        %s650 = sld [smem:[#allocation5 + %s39]]
        %p651 = scmp.eq.s32.totalorder %s39, 0
        // Predicated region
        $region97: #{tpu_custom_call.1} parent=71 // pred_check
          %p652 = pneg %p651
        $region98: #{tpu_custom_call.1} parent=71 // pred_check_branch
          %654 = sbr.rel (%p652) target = $region100
        $region99: #{tpu_custom_call.1} parent=71 // pred_region
          %v655 = vld [vmem:[%s635] sm:$0xff]
          %v656 = vld [vmem:[%s635 + $0x8] sm:$0xff]
          %v657 = vld [vmem:[%s635 + $0x10] sm:$0xff]
          %v658 = vld [vmem:[%s635 + $0x18] sm:$0xff]
          %v659 = vld [vmem:[%s635 + $0x20] sm:$0xff]
          %v660 = vld [vmem:[%s635 + $0x28] sm:$0xff]
          %v661 = vld [vmem:[%s635 + $0x30] sm:$0xff]
          %v662 = vld [vmem:[%s635 + $0x38] sm:$0xff]
          %v663 = vld [vmem:[%s635 + $0x40] sm:$0xff]
          %v664 = vld [vmem:[%s635 + $0x48] sm:$0xff]
          %v665 = vld [vmem:[%s635 + $0x50] sm:$0xff]
          %v666 = vld [vmem:[%s635 + $0x58] sm:$0xff]
          %v667 = vld [vmem:[%s635 + $0x60] sm:$0xff]
          %v668 = vld [vmem:[%s635 + $0x68] sm:$0xff]
          %v669 = vld [vmem:[%s635 + $0x70] sm:$0xff]
          %v670 = vld [vmem:[%s635 + $0x78] sm:$0xff]
          %v671 = vld [vmem:[#allocation6] sm:$0x1]
          %673 = vset.pattern.permute.xlu0 0
          %674 = vperm.xlu0 %673, %v655
          %v675 = vpop.permute.xlu0 %674
          %678 = vset.pattern.permute.xlu0 0
          %679 = vperm.xlu0 %678, %v656
          %v680 = vpop.permute.xlu0 %679
          %683 = vset.pattern.permute.xlu0 0
          %684 = vperm.xlu0 %683, %v657
          %v685 = vpop.permute.xlu0 %684
          %688 = vset.pattern.permute.xlu0 0
          %689 = vperm.xlu0 %688, %v658
          %v690 = vpop.permute.xlu0 %689
          %693 = vset.pattern.permute.xlu0 0
          %694 = vperm.xlu0 %693, %v659
          %v695 = vpop.permute.xlu0 %694
          %698 = vset.pattern.permute.xlu0 0
          %699 = vperm.xlu0 %698, %v660
          %v700 = vpop.permute.xlu0 %699
          %703 = vset.pattern.permute.xlu0 0
          %704 = vperm.xlu0 %703, %v661
          %v705 = vpop.permute.xlu0 %704
          %708 = vset.pattern.permute.xlu0 0
          %709 = vperm.xlu0 %708, %v662
          %v710 = vpop.permute.xlu0 %709
          %713 = vset.pattern.permute.xlu0 0
          %714 = vperm.xlu0 %713, %v663
          %v715 = vpop.permute.xlu0 %714
          %718 = vset.pattern.permute.xlu0 0
          %719 = vperm.xlu0 %718, %v664
          %v720 = vpop.permute.xlu0 %719
          %723 = vset.pattern.permute.xlu0 0
          %724 = vperm.xlu0 %723, %v665
          %v725 = vpop.permute.xlu0 %724
          %728 = vset.pattern.permute.xlu0 0
          %729 = vperm.xlu0 %728, %v666
          %v730 = vpop.permute.xlu0 %729
          %733 = vset.pattern.permute.xlu0 0
          %734 = vperm.xlu0 %733, %v667
          %v735 = vpop.permute.xlu0 %734
          %738 = vset.pattern.permute.xlu0 0
          %739 = vperm.xlu0 %738, %v668
          %v740 = vpop.permute.xlu0 %739
          %743 = vset.pattern.permute.xlu0 0
          %744 = vperm.xlu0 %743, %v669
          %v745 = vpop.permute.xlu0 %744
          %748 = vset.pattern.permute.xlu0 0
          %749 = vperm.xlu0 %748, %v670
          %v750 = vpop.permute.xlu0 %749
          %v753 = vlaneseq
          %v754 = vshrl.u32 %v753, 7
          %v755 = vsub.s32 0, %v754
          %v756 = vrot.slane %v671, %v755
          %v758 = vmul.f32 %v675, %v756
          %v759 = vmul.f32 %v680, %v756
          %v760 = vmul.f32 %v685, %v756
          %v761 = vmul.f32 %v690, %v756
          %v762 = vmul.f32 %v695, %v756
          %v763 = vmul.f32 %v700, %v756
          %v764 = vmul.f32 %v705, %v756
          %v765 = vmul.f32 %v710, %v756
          %v766 = vmul.f32 %v715, %v756
          %v767 = vmul.f32 %v720, %v756
          %v768 = vmul.f32 %v725, %v756
          %v769 = vmul.f32 %v730, %v756
          %v770 = vmul.f32 %v735, %v756
          %v771 = vmul.f32 %v740, %v756
          %v772 = vmul.f32 %v745, %v756
          %v773 = vmul.f32 %v750, %v756
          %v774 = vld [vmem:[#allocation9] sm:$0x1]
          %v776 = vlaneseq
          %v777 = vshrl.u32 %v776, 7
          %v778 = vsub.s32 0, %v777
          %v779 = vrot.slane %v774, %v778
          %v781 = vadd.f32 %v758, %v779
          %v782 = vadd.f32 %v759, %v779
          %v783 = vadd.f32 %v760, %v779
          %v784 = vadd.f32 %v761, %v779
          %v785 = vadd.f32 %v762, %v779
          %v786 = vadd.f32 %v763, %v779
          %v787 = vadd.f32 %v764, %v779
          %v788 = vadd.f32 %v765, %v779
          %v789 = vadd.f32 %v766, %v779
          %v790 = vadd.f32 %v767, %v779
          %v791 = vadd.f32 %v768, %v779
          %v792 = vadd.f32 %v769, %v779
          %v793 = vadd.f32 %v770, %v779
          %v794 = vadd.f32 %v771, %v779
          %v795 = vadd.f32 %v772, %v779
          %v796 = vadd.f32 %v773, %v779
          %vm797 = vcmask 523264
          %798 = vst.msk [vmem:[#allocation2] sm:$0xff] %vm797, 0.0
          %799 = vst.msk [vmem:[#allocation2 + $0x8] sm:$0xff] %vm797, %v781
          %800 = vst.msk [vmem:[#allocation2 + $0x10] sm:$0xff] %vm797, %v782
          %801 = vst.msk [vmem:[#allocation2 + $0x18] sm:$0xff] %vm797, %v783
          %802 = vst.msk [vmem:[#allocation2 + $0x20] sm:$0xff] %vm797, %v784
          %803 = vst.msk [vmem:[#allocation2 + $0x28] sm:$0xff] %vm797, %v785
          %804 = vst.msk [vmem:[#allocation2 + $0x30] sm:$0xff] %vm797, %v786
          %805 = vst.msk [vmem:[#allocation2 + $0x38] sm:$0xff] %vm797, %v787
          %806 = vst.msk [vmem:[#allocation2 + $0x40] sm:$0xff] %vm797, %v788
          %807 = vst.msk [vmem:[#allocation2 + $0x48] sm:$0xff] %vm797, %v789
          %808 = vst.msk [vmem:[#allocation2 + $0x50] sm:$0xff] %vm797, %v790
          %809 = vst.msk [vmem:[#allocation2 + $0x58] sm:$0xff] %vm797, %v791
          %810 = vst.msk [vmem:[#allocation2 + $0x60] sm:$0xff] %vm797, %v792
          %811 = vst.msk [vmem:[#allocation2 + $0x68] sm:$0xff] %vm797, %v793
          %812 = vst.msk [vmem:[#allocation2 + $0x70] sm:$0xff] %vm797, %v794
          %813 = vst.msk [vmem:[#allocation2 + $0x78] sm:$0xff] %vm797, %v795
          %814 = vst.msk [vmem:[#allocation2 + $0x80] sm:$0xff] %vm797, %v796
          %815 = vst.msk [vmem:[#allocation3] sm:$0xff] %vm797, 0.0
          %816 = vst.msk [vmem:[#allocation3 + $0x8] sm:$0xff] %vm797, 0.0
          %817 = vst.msk [vmem:[#allocation3 + $0x10] sm:$0xff] %vm797, 0.0
          %818 = vst.msk [vmem:[#allocation3 + $0x18] sm:$0xff] %vm797, 0.0
          %819 = vst.msk [vmem:[#allocation3 + $0x20] sm:$0xff] %vm797, 0.0
          %820 = vst.msk [vmem:[#allocation3 + $0x28] sm:$0xff] %vm797, 0.0
          %821 = vst.msk [vmem:[#allocation3 + $0x30] sm:$0xff] %vm797, 0.0
          %822 = vst.msk [vmem:[#allocation3 + $0x38] sm:$0xff] %vm797, 0.0
          %823 = vst.msk [vmem:[#allocation3 + $0x40] sm:$0xff] %vm797, 0.0
          %824 = vst.msk [vmem:[#allocation3 + $0x48] sm:$0xff] %vm797, 0.0
          %825 = vst.msk [vmem:[#allocation3 + $0x50] sm:$0xff] %vm797, 0.0
          %826 = vst.msk [vmem:[#allocation3 + $0x58] sm:$0xff] %vm797, 0.0
          %827 = vst.msk [vmem:[#allocation3 + $0x60] sm:$0xff] %vm797, 0.0
          %828 = vst.msk [vmem:[#allocation3 + $0x68] sm:$0xff] %vm797, 0.0
          %829 = vst.msk [vmem:[#allocation3 + $0x70] sm:$0xff] %vm797, 0.0
          %830 = vst.msk [vmem:[#allocation3 + $0x78] sm:$0xff] %vm797, 0.0
        $region100: #{tpu_custom_call.1} parent=71 // pred_fallthru
          _
        %v831 = vld [vmem:[#allocation2 + $0x8] sm:$0xff]
        %v832 = vld [vmem:[#allocation2 + $0x10] sm:$0xff]
        %v833 = vld [vmem:[#allocation2 + $0x18] sm:$0xff]
        %v834 = vld [vmem:[#allocation2 + $0x20] sm:$0xff]
        %v835 = vld [vmem:[#allocation2 + $0x28] sm:$0xff]
        %v836 = vld [vmem:[#allocation2 + $0x30] sm:$0xff]
        %v837 = vld [vmem:[#allocation2 + $0x38] sm:$0xff]
        %v838 = vld [vmem:[#allocation2 + $0x40] sm:$0xff]
        %v839 = vld [vmem:[#allocation2 + $0x48] sm:$0xff]
        %v840 = vld [vmem:[#allocation2 + $0x50] sm:$0xff]
        %v841 = vld [vmem:[#allocation2 + $0x58] sm:$0xff]
        %v842 = vld [vmem:[#allocation2 + $0x60] sm:$0xff]
        %v843 = vld [vmem:[#allocation2 + $0x68] sm:$0xff]
        %v844 = vld [vmem:[#allocation2 + $0x70] sm:$0xff]
        %v845 = vld [vmem:[#allocation2 + $0x78] sm:$0xff]
        %v846 = vld [vmem:[#allocation2 + $0x80] sm:$0xff]
        %s847 = smul.u32 %s650, 2
        %s848 = ssub.s32 8, %s847
        %s849 = scalar_lea.vmem [#allocation2], %s848
        %v850 = vld [vmem:[%s849] sm:$0xff]
        %v851 = vld [vmem:[%s849 + $0x8] sm:$0xff]
        %v852 = vld [vmem:[%s849 + $0x10] sm:$0xff]
        %v853 = vld [vmem:[%s849 + $0x18] sm:$0xff]
        %v854 = vld [vmem:[%s849 + $0x20] sm:$0xff]
        %v855 = vld [vmem:[%s849 + $0x28] sm:$0xff]
        %v856 = vld [vmem:[%s849 + $0x30] sm:$0xff]
        %v857 = vld [vmem:[%s849 + $0x38] sm:$0xff]
        %v858 = vld [vmem:[%s849 + $0x40] sm:$0xff]
        %v859 = vld [vmem:[%s849 + $0x48] sm:$0xff]
        %v860 = vld [vmem:[%s849 + $0x50] sm:$0xff]
        %v861 = vld [vmem:[%s849 + $0x58] sm:$0xff]
        %v862 = vld [vmem:[%s849 + $0x60] sm:$0xff]
        %v863 = vld [vmem:[%s849 + $0x68] sm:$0xff]
        %v864 = vld [vmem:[%s849 + $0x70] sm:$0xff]
        %v865 = vld [vmem:[%s849 + $0x78] sm:$0xff]
        %s866 = ssub.s32 8, %s650
        %s867 = scalar_lea.vmem [#allocation2], %s866
        %v868 = vld [vmem:[%s867] sm:$0xff]
        %v869 = vld [vmem:[%s867 + $0x8] sm:$0xff]
        %v870 = vld [vmem:[%s867 + $0x10] sm:$0xff]
        %v871 = vld [vmem:[%s867 + $0x18] sm:$0xff]
        %v872 = vld [vmem:[%s867 + $0x20] sm:$0xff]
        %v873 = vld [vmem:[%s867 + $0x28] sm:$0xff]
        %v874 = vld [vmem:[%s867 + $0x30] sm:$0xff]
        %v875 = vld [vmem:[%s867 + $0x38] sm:$0xff]
        %v876 = vld [vmem:[%s867 + $0x40] sm:$0xff]
        %v877 = vld [vmem:[%s867 + $0x48] sm:$0xff]
        %v878 = vld [vmem:[%s867 + $0x50] sm:$0xff]
        %v879 = vld [vmem:[%s867 + $0x58] sm:$0xff]
        %v880 = vld [vmem:[%s867 + $0x60] sm:$0xff]
        %v881 = vld [vmem:[%s867 + $0x68] sm:$0xff]
        %v882 = vld [vmem:[%s867 + $0x70] sm:$0xff]
        %v883 = vld [vmem:[%s867 + $0x78] sm:$0xff]
        %900 = vrot.lane.b32.xlu0 %v868, 64
        %v901 = vpop.permute.xlu0 %900
        %902 = vrot.lane.b32.xlu0 %v869, 64
        %v903 = vpop.permute.xlu0 %902
        %904 = vrot.lane.b32.xlu0 %v870, 64
        %v905 = vpop.permute.xlu0 %904
        %906 = vrot.lane.b32.xlu0 %v871, 64
        %v907 = vpop.permute.xlu0 %906
        %908 = vrot.lane.b32.xlu0 %v872, 64
        %v909 = vpop.permute.xlu0 %908
        %910 = vrot.lane.b32.xlu0 %v873, 64
        %v911 = vpop.permute.xlu0 %910
        %912 = vrot.lane.b32.xlu0 %v874, 64
        %v913 = vpop.permute.xlu0 %912
        %914 = vrot.lane.b32.xlu0 %v875, 64
        %v915 = vpop.permute.xlu0 %914
        %916 = vrot.lane.b32.xlu0 %v876, 64
        %v917 = vpop.permute.xlu0 %916
        %918 = vrot.lane.b32.xlu0 %v877, 64
        %v919 = vpop.permute.xlu0 %918
        %920 = vrot.lane.b32.xlu0 %v878, 64
        %v921 = vpop.permute.xlu0 %920
        %922 = vrot.lane.b32.xlu0 %v879, 64
        %v923 = vpop.permute.xlu0 %922
        %924 = vrot.lane.b32.xlu0 %v880, 64
        %v925 = vpop.permute.xlu0 %924
        %926 = vrot.lane.b32.xlu0 %v881, 64
        %v927 = vpop.permute.xlu0 %926
        %928 = vrot.lane.b32.xlu0 %v882, 64
        %v929 = vpop.permute.xlu0 %928
        %930 = vrot.lane.b32.xlu0 %v883, 64
        %v931 = vpop.permute.xlu0 %930
        %vm948 = vcmask 523264
        %v949 = vsel %vm948, %v850, %v901
        %v950 = vsel %vm948, %v851, %v903
        %v951 = vsel %vm948, %v852, %v905
        %v952 = vsel %vm948, %v853, %v907
        %v953 = vsel %vm948, %v854, %v909
        %v954 = vsel %vm948, %v855, %v911
        %v955 = vsel %vm948, %v856, %v913
        %v956 = vsel %vm948, %v857, %v915
        %v957 = vsel %vm948, %v858, %v917
        %v958 = vsel %vm948, %v859, %v919
        %v959 = vsel %vm948, %v860, %v921
        %v960 = vsel %vm948, %v861, %v923
        %v961 = vsel %vm948, %v862, %v925
        %v962 = vsel %vm948, %v863, %v927
        %v963 = vsel %vm948, %v864, %v929
        %v964 = vsel %vm948, %v865, %v931
        %v965 = vpack.c.bf16 %v950, %v949
        %v966 = vpack.c.bf16 %v832, %v831
        %v967 = vpack.c.bf16 %v952, %v951
        %v968 = vpack.c.bf16 %v834, %v833
        %v969 = vpack.c.bf16 %v954, %v953
        %v970 = vpack.c.bf16 %v836, %v835
        %v971 = vpack.c.bf16 %v956, %v955
        %v972 = vpack.c.bf16 %v838, %v837
        %v973 = vpack.c.bf16 %v958, %v957
        %v974 = vpack.c.bf16 %v840, %v839
        %v975 = vpack.c.bf16 %v960, %v959
        %v976 = vpack.c.bf16 %v842, %v841
        %v977 = vpack.c.bf16 %v962, %v961
        %v978 = vpack.c.bf16 %v844, %v843
        %v979 = vpack.c.bf16 %v964, %v963
        %v980 = vpack.c.bf16 %v846, %v845
        %v981 = vld [vmem:[%s542] sm:$0xf]
        %v982 = vld [vmem:[%s542 + $0x4] sm:$0xf]
        %v983 = vld [vmem:[%s542 + $0x8] sm:$0xf]
        %v984 = vld [vmem:[%s542 + $0xc] sm:$0xf]
        %v985 = vld [vmem:[%s542 + $0x10] sm:$0xf]
        %v986 = vld [vmem:[%s542 + $0x14] sm:$0xf]
        %v987 = vld [vmem:[%s542 + $0x18] sm:$0xf]
        %v988 = vld [vmem:[%s542 + $0x1c] sm:$0xf]
        %v989 = vld [vmem:[%s542 + $0x20] sm:$0xf]
        %v990 = vld [vmem:[%s542 + $0x24] sm:$0xf]
        %v991 = vld [vmem:[%s542 + $0x28] sm:$0xf]
        %v992 = vld [vmem:[%s542 + $0x2c] sm:$0xf]
        %v993 = vld [vmem:[%s542 + $0x30] sm:$0xf]
        %v994 = vld [vmem:[%s542 + $0x34] sm:$0xf]
        %v995 = vld [vmem:[%s542 + $0x38] sm:$0xf]
        %v996 = vld [vmem:[%s542 + $0x3c] sm:$0xf]
        %v997 = vld [vmem:[%s542 + $0x40] sm:$0xf]
        %v998 = vld [vmem:[%s542 + $0x44] sm:$0xf]
        %v999 = vld [vmem:[%s542 + $0x48] sm:$0xf]
        %v1000 = vld [vmem:[%s542 + $0x4c] sm:$0xf]
        %v1001 = vld [vmem:[%s542 + $0x50] sm:$0xf]
        %v1002 = vld [vmem:[%s542 + $0x54] sm:$0xf]
        %v1003 = vld [vmem:[%s542 + $0x58] sm:$0xf]
        %v1004 = vld [vmem:[%s542 + $0x5c] sm:$0xf]
        %v1005 = vld [vmem:[%s550] sm:$0x1]
        %v1007 = vlaneseq
        %v1008 = vshrl.u32 %v1007, 7
        %v1009 = vsub.s32 0, %v1008
        %v1010 = vrot.slane %v1005, %v1009
        %v1036 = vunpack.c.l.b16 %v981
        %v1037 = vunpack.c.l.b16 %v982
        %v1038 = vunpack.c.l.b16 %v983
        %v1039 = vunpack.c.l.b16 %v984
        %v1040 = vunpack.c.l.b16 %v985
        %v1041 = vunpack.c.l.b16 %v986
        %v1042 = vunpack.c.l.b16 %v987
        %v1043 = vunpack.c.l.b16 %v988
        %v1044 = vunpack.c.l.b16 %v989
        %v1045 = vunpack.c.l.b16 %v990
        %v1046 = vunpack.c.l.b16 %v991
        %v1047 = vunpack.c.l.b16 %v992
        %v1048 = vunpack.c.l.b16 %v993
        %v1049 = vunpack.c.l.b16 %v994
        %v1050 = vunpack.c.l.b16 %v995
        %v1051 = vunpack.c.l.b16 %v996
        %v1052 = vunpack.c.l.b16 %v997
        %v1053 = vunpack.c.l.b16 %v998
        %v1054 = vunpack.c.l.b16 %v999
        %v1055 = vunpack.c.l.b16 %v1000
        %v1056 = vunpack.c.l.b16 %v1001
        %v1057 = vunpack.c.l.b16 %v1002
        %v1058 = vunpack.c.l.b16 %v1003
        %v1059 = vunpack.c.l.b16 %v1004
        %v1060 = vpack.c.b16 %v1037, %v1036
        %v1061 = vpack.c.b16 %v1039, %v1038
        %v1062 = vpack.c.b16 %v1041, %v1040
        %v1063 = vpack.c.b16 %v1043, %v1042
        %v1064 = vpack.c.b16 %v1045, %v1044
        %v1065 = vpack.c.b16 %v1047, %v1046
        %v1066 = vpack.c.b16 %v1049, %v1048
        %v1067 = vpack.c.b16 %v1051, %v1050
        %v1068 = vpack.c.b16 %v1053, %v1052
        %v1069 = vpack.c.b16 %v1055, %v1054
        %v1070 = vpack.c.b16 %v1057, %v1056
        %v1071 = vpack.c.b16 %v1059, %v1058
        %v1085 = vsel %vm948, %v966, 0
        %v1088 = vsel %vm948, %v968, 0
        %v1091 = vsel %vm948, %v970, 0
        %v1094 = vsel %vm948, %v972, 0
        %v1097 = vsel %vm948, %v974, 0
        %v1100 = vsel %vm948, %v976, 0
        %v1103 = vsel %vm948, %v978, 0
        %v1106 = vsel %vm948, %v980, 0
        %1108 = vmatprep.subr.bf16.mxu0 0
        %1109 = vmatpush1.bf16.msra.mxu0 %v1060
        %1110 = vmatprep.subr.bf16.mxu0 0
        %1111 = vmatpush1.bf16.msra.mxu0 %v1061
        %1112 = vmatprep.subr.bf16.mxu0 0
        %1113 = vmatpush1.bf16.msra.mxu0 %v1062
        %1114 = vmatprep.subr.bf16.mxu0 0
        %1115 = vmatpush1.bf16.msra.mxu0 %v1063
        %1116 = vmatprep.subr.bf16.mxu0 0
        %1117 = vmatpush1.bf16.msra.mxu0 %v1064
        %1118 = vmatprep.subr.bf16.mxu0 0
        %1119 = vmatpush1.bf16.msra.mxu0 %v1065
        %1120 = vmatprep.subr.bf16.mxu0 0
        %1121 = vmatpush1.bf16.msra.mxu0 %v1066
        %1122 = vmatprep.subr.bf16.mxu0 0
        %1123 = vmatpush1.bf16.msra.mxu0 %v1067
        %1124 = vmatprep.subr.bf16.mxu0 0
        %1125 = vmatpush1.bf16.msra.mxu0 %v1068
        %1126 = vmatprep.subr.bf16.mxu0 0
        %1127 = vmatpush1.bf16.msra.mxu0 %v1069
        %1128 = vmatprep.subr.bf16.mxu0 0
        %1129 = vmatpush1.bf16.msra.mxu0 %v1070
        %1130 = vmatprep.subr.bf16.mxu0 0
        %1131 = vmatpush1.bf16.msra.mxu0 %v1071
        %1132 = vmatprep.subr.bf16.mxu0 0
        %1133 = vmatpush1.bf16.msra.mxu0 0
        %1134 = vmatprep.subr.bf16.mxu0 0
        %1135 = vmatpush1.bf16.msra.mxu0 0
        %1136 = vmatprep.subr.bf16.mxu0 0
        %1137 = vmatpush1.bf16.msra.mxu0 0
        %1138 = vmatprep.subr.bf16.mxu0 0
        %1139 = vmatpush1.bf16.msra.mxu0 0
        %1140 = vmatprep.mubr.bf16.mxu0 %v1085
        %1141 = vmatmul.mubr.bf16.gmra.mrb[0].mxu0 %v965
        %v1142 = vpop.f32.mrb[0].mxu0
        %v1143 = vadd.f32 %v1010, %v1142
        %v1144 = vpop.f32.mrb[0].mxu0
        %v1145 = vpop.f32.mrb[0].mxu0
        %v1146 = vadd.f32 %v1010, %v1145
        %v1147 = vpop.f32.mrb[0].mxu0
        %1148 = vmatprep.mubr.bf16.mxu0 %v1088
        %1149 = vmatmul.mubr.bf16.gmra.mrb[0].mxu0 %v967
        %v1150 = vpop.f32.mrb[0].mxu0
        %v1151 = vadd.f32 %v1010, %v1150
        %v1152 = vpop.f32.mrb[0].mxu0
        %v1153 = vpop.f32.mrb[0].mxu0
        %v1154 = vadd.f32 %v1010, %v1153
        %v1155 = vpop.f32.mrb[0].mxu0
        %1156 = vmatprep.mubr.bf16.mxu0 %v1091
        %1157 = vmatmul.mubr.bf16.gmra.mrb[0].mxu0 %v969
        %v1158 = vpop.f32.mrb[0].mxu0
        %v1159 = vadd.f32 %v1010, %v1158
        %v1160 = vpop.f32.mrb[0].mxu0
        %v1161 = vpop.f32.mrb[0].mxu0
        %v1162 = vadd.f32 %v1010, %v1161
        %v1163 = vpop.f32.mrb[0].mxu0
        %1164 = vmatprep.mubr.bf16.mxu0 %v1094
        %1165 = vmatmul.mubr.bf16.gmra.mrb[0].mxu0 %v971
        %v1166 = vpop.f32.mrb[0].mxu0
        %v1167 = vadd.f32 %v1010, %v1166
        %v1168 = vpop.f32.mrb[0].mxu0
        %v1169 = vpop.f32.mrb[0].mxu0
        %v1170 = vadd.f32 %v1010, %v1169
        %v1171 = vpop.f32.mrb[0].mxu0
        %1172 = vmatprep.mubr.bf16.mxu0 %v1097
        %1173 = vmatmul.mubr.bf16.gmra.mrb[0].mxu0 %v973
        %v1174 = vpop.f32.mrb[0].mxu0
        %v1175 = vadd.f32 %v1010, %v1174
        %v1176 = vpop.f32.mrb[0].mxu0
        %v1177 = vpop.f32.mrb[0].mxu0
        %v1178 = vadd.f32 %v1010, %v1177
        %v1179 = vpop.f32.mrb[0].mxu0
        %1180 = vmatprep.mubr.bf16.mxu0 %v1100
        %1181 = vmatmul.mubr.bf16.gmra.mrb[0].mxu0 %v975
        %v1182 = vpop.f32.mrb[0].mxu0
        %v1183 = vadd.f32 %v1010, %v1182
        %v1184 = vpop.f32.mrb[0].mxu0
        %v1185 = vpop.f32.mrb[0].mxu0
        %v1186 = vadd.f32 %v1010, %v1185
        %v1187 = vpop.f32.mrb[0].mxu0
        %1188 = vmatprep.mubr.bf16.mxu0 %v1103
        %1189 = vmatmul.mubr.bf16.gmra.mrb[0].mxu0 %v977
        %v1190 = vpop.f32.mrb[0].mxu0
        %v1191 = vadd.f32 %v1010, %v1190
        %v1192 = vpop.f32.mrb[0].mxu0
        %v1193 = vpop.f32.mrb[0].mxu0
        %v1194 = vadd.f32 %v1010, %v1193
        %v1195 = vpop.f32.mrb[0].mxu0
        %1196 = vmatprep.mubr.bf16.mxu0 %v1106
        %1197 = vmatmul.mubr.bf16.gmra.mrb[0].mxu0 %v979
        %v1198 = vpop.f32.mrb[0].mxu0
        %v1199 = vadd.f32 %v1010, %v1198
        %v1200 = vpop.f32.mrb[0].mxu0
        %v1201 = vpop.f32.mrb[0].mxu0
        %v1202 = vadd.f32 %v1010, %v1201
        %v1203 = vpop.f32.mrb[0].mxu0
        %1204 = vdwg.mxu0
        %v1205 = vtanh.pop %v1143
        %v1206 = vtanh.pop %v1146
        %v1207 = vtanh.pop %v1151
        %v1208 = vtanh.pop %v1154
        %v1209 = vtanh.pop %v1159
        %v1210 = vtanh.pop %v1162
        %v1211 = vtanh.pop %v1167
        %v1212 = vtanh.pop %v1170
        %v1213 = vtanh.pop %v1175
        %v1214 = vtanh.pop %v1178
        %v1215 = vtanh.pop %v1183
        %v1216 = vtanh.pop %v1186
        %v1217 = vtanh.pop %v1191
        %v1218 = vtanh.pop %v1194
        %v1219 = vtanh.pop %v1199
        %v1220 = vtanh.pop %v1202
        %v1221 = vxor.u32 %v1143, 2147483648
        %v1222 = vxor.u32 %v1146, 2147483648
        %v1223 = vxor.u32 %v1151, 2147483648
        %v1224 = vxor.u32 %v1154, 2147483648
        %v1225 = vxor.u32 %v1159, 2147483648
        %v1226 = vxor.u32 %v1162, 2147483648
        %v1227 = vxor.u32 %v1167, 2147483648
        %v1228 = vxor.u32 %v1170, 2147483648
        %v1229 = vxor.u32 %v1175, 2147483648
        %v1230 = vxor.u32 %v1178, 2147483648
        %v1231 = vxor.u32 %v1183, 2147483648
        %v1232 = vxor.u32 %v1186, 2147483648
        %v1233 = vxor.u32 %v1191, 2147483648
        %v1234 = vxor.u32 %v1194, 2147483648
        %v1235 = vxor.u32 %v1199, 2147483648
        %v1236 = vxor.u32 %v1202, 2147483648
        %v1237 = vmul.f32 %v1221, 1.442695
        %v1238 = vpow.pop %v1237
        %v1239 = vmul.f32 %v1222, 1.442695
        %v1240 = vpow.pop %v1239
        %v1241 = vmul.f32 %v1223, 1.442695
        %v1242 = vpow.pop %v1241
        %v1243 = vmul.f32 %v1224, 1.442695
        %v1244 = vpow.pop %v1243
        %v1245 = vmul.f32 %v1225, 1.442695
        %v1246 = vpow.pop %v1245
        %v1247 = vmul.f32 %v1226, 1.442695
        %v1248 = vpow.pop %v1247
        %v1249 = vmul.f32 %v1227, 1.442695
        %v1250 = vpow.pop %v1249
        %v1251 = vmul.f32 %v1228, 1.442695
        %v1252 = vpow.pop %v1251
        %v1253 = vmul.f32 %v1229, 1.442695
        %v1254 = vpow.pop %v1253
        %v1255 = vmul.f32 %v1230, 1.442695
        %v1256 = vpow.pop %v1255
        %v1257 = vmul.f32 %v1231, 1.442695
        %v1258 = vpow.pop %v1257
        %v1259 = vmul.f32 %v1232, 1.442695
        %v1260 = vpow.pop %v1259
        %v1261 = vmul.f32 %v1233, 1.442695
        %v1262 = vpow.pop %v1261
        %v1263 = vmul.f32 %v1234, 1.442695
        %v1264 = vpow.pop %v1263
        %v1265 = vmul.f32 %v1235, 1.442695
        %v1266 = vpow.pop %v1265
        %v1267 = vmul.f32 %v1236, 1.442695
        %v1268 = vpow.pop %v1267
        %v1269 = vadd.f32 %v1238, 1.0
        %v1270 = vadd.f32 %v1240, 1.0
        %v1271 = vadd.f32 %v1242, 1.0
        %v1272 = vadd.f32 %v1244, 1.0
        %v1273 = vadd.f32 %v1246, 1.0
        %v1274 = vadd.f32 %v1248, 1.0
        %v1275 = vadd.f32 %v1250, 1.0
        %v1276 = vadd.f32 %v1252, 1.0
        %v1277 = vadd.f32 %v1254, 1.0
        %v1278 = vadd.f32 %v1256, 1.0
        %v1279 = vadd.f32 %v1258, 1.0
        %v1280 = vadd.f32 %v1260, 1.0
        %v1281 = vadd.f32 %v1262, 1.0
        %v1282 = vadd.f32 %v1264, 1.0
        %v1283 = vadd.f32 %v1266, 1.0
        %v1284 = vadd.f32 %v1268, 1.0
        %v1285 = vrcp.pop %v1269
        %v1286 = vmul.f32 1.0, %v1285
        %v1287 = vrcp.pop %v1270
        %v1288 = vmul.f32 1.0, %v1287
        %v1289 = vrcp.pop %v1271
        %v1290 = vmul.f32 1.0, %v1289
        %v1291 = vrcp.pop %v1272
        %v1292 = vmul.f32 1.0, %v1291
        %v1293 = vrcp.pop %v1273
        %v1294 = vmul.f32 1.0, %v1293
        %v1295 = vrcp.pop %v1274
        %v1296 = vmul.f32 1.0, %v1295
        %v1297 = vrcp.pop %v1275
        %v1298 = vmul.f32 1.0, %v1297
        %v1299 = vrcp.pop %v1276
        %v1300 = vmul.f32 1.0, %v1299
        %v1301 = vrcp.pop %v1277
        %v1302 = vmul.f32 1.0, %v1301
        %v1303 = vrcp.pop %v1278
        %v1304 = vmul.f32 1.0, %v1303
        %v1305 = vrcp.pop %v1279
        %v1306 = vmul.f32 1.0, %v1305
        %v1307 = vrcp.pop %v1280
        %v1308 = vmul.f32 1.0, %v1307
        %v1309 = vrcp.pop %v1281
        %v1310 = vmul.f32 1.0, %v1309
        %v1311 = vrcp.pop %v1282
        %v1312 = vmul.f32 1.0, %v1311
        %v1313 = vrcp.pop %v1283
        %v1314 = vmul.f32 1.0, %v1313
        %v1315 = vrcp.pop %v1284
        %v1316 = vmul.f32 1.0, %v1315
        %1333 = vrot.lane.b32.xlu0 %v1286, 64
        %v1334 = vpop.permute.xlu0 %1333
        %1335 = vrot.lane.b32.xlu0 %v1288, 64
        %v1336 = vpop.permute.xlu0 %1335
        %1337 = vrot.lane.b32.xlu0 %v1290, 64
        %v1338 = vpop.permute.xlu0 %1337
        %1339 = vrot.lane.b32.xlu0 %v1292, 64
        %v1340 = vpop.permute.xlu0 %1339
        %1341 = vrot.lane.b32.xlu0 %v1294, 64
        %v1342 = vpop.permute.xlu0 %1341
        %1343 = vrot.lane.b32.xlu0 %v1296, 64
        %v1344 = vpop.permute.xlu0 %1343
        %1345 = vrot.lane.b32.xlu0 %v1298, 64
        %v1346 = vpop.permute.xlu0 %1345
        %1347 = vrot.lane.b32.xlu0 %v1300, 64
        %v1348 = vpop.permute.xlu0 %1347
        %1349 = vrot.lane.b32.xlu0 %v1302, 64
        %v1350 = vpop.permute.xlu0 %1349
        %1351 = vrot.lane.b32.xlu0 %v1304, 64
        %v1352 = vpop.permute.xlu0 %1351
        %1353 = vrot.lane.b32.xlu0 %v1306, 64
        %v1354 = vpop.permute.xlu0 %1353
        %1355 = vrot.lane.b32.xlu0 %v1308, 64
        %v1356 = vpop.permute.xlu0 %1355
        %1357 = vrot.lane.b32.xlu0 %v1310, 64
        %v1358 = vpop.permute.xlu0 %1357
        %1359 = vrot.lane.b32.xlu0 %v1312, 64
        %v1360 = vpop.permute.xlu0 %1359
        %1361 = vrot.lane.b32.xlu0 %v1314, 64
        %v1362 = vpop.permute.xlu0 %1361
        %1363 = vrot.lane.b32.xlu0 %v1316, 64
        %v1364 = vpop.permute.xlu0 %1363
        %v1381 = vmul.f32 %v1205, %v1334
        %v1382 = vmul.f32 %v1206, %v1336
        %v1383 = vmul.f32 %v1207, %v1338
        %v1384 = vmul.f32 %v1208, %v1340
        %v1385 = vmul.f32 %v1209, %v1342
        %v1386 = vmul.f32 %v1210, %v1344
        %v1387 = vmul.f32 %v1211, %v1346
        %v1388 = vmul.f32 %v1212, %v1348
        %v1389 = vmul.f32 %v1213, %v1350
        %v1390 = vmul.f32 %v1214, %v1352
        %v1391 = vmul.f32 %v1215, %v1354
        %v1392 = vmul.f32 %v1216, %v1356
        %v1393 = vmul.f32 %v1217, %v1358
        %v1394 = vmul.f32 %v1218, %v1360
        %v1395 = vmul.f32 %v1219, %v1362
        %v1396 = vmul.f32 %v1220, %v1364
        %v1397 = vpack.c.bf16 %v1382, %v1381
        %v1398 = vpack.c.bf16 %v1384, %v1383
        %v1399 = vpack.c.bf16 %v1386, %v1385
        %v1400 = vpack.c.bf16 %v1388, %v1387
        %v1401 = vpack.c.bf16 %v1390, %v1389
        %v1402 = vpack.c.bf16 %v1392, %v1391
        %v1403 = vpack.c.bf16 %v1394, %v1393
        %v1404 = vpack.c.bf16 %v1396, %v1395
        %v1405 = vld [vmem:[#allocation3] sm:$0xff]
        %v1406 = vld [vmem:[#allocation3 + $0x8] sm:$0xff]
        %v1407 = vld [vmem:[#allocation3 + $0x10] sm:$0xff]
        %v1408 = vld [vmem:[#allocation3 + $0x18] sm:$0xff]
        %v1409 = vld [vmem:[#allocation3 + $0x20] sm:$0xff]
        %v1410 = vld [vmem:[#allocation3 + $0x28] sm:$0xff]
        %v1411 = vld [vmem:[#allocation3 + $0x30] sm:$0xff]
        %v1412 = vld [vmem:[#allocation3 + $0x38] sm:$0xff]
        %v1413 = vld [vmem:[#allocation3 + $0x40] sm:$0xff]
        %v1414 = vld [vmem:[#allocation3 + $0x48] sm:$0xff]
        %v1415 = vld [vmem:[#allocation3 + $0x50] sm:$0xff]
        %v1416 = vld [vmem:[#allocation3 + $0x58] sm:$0xff]
        %v1417 = vld [vmem:[#allocation3 + $0x60] sm:$0xff]
        %v1418 = vld [vmem:[#allocation3 + $0x68] sm:$0xff]
        %v1419 = vld [vmem:[#allocation3 + $0x70] sm:$0xff]
        %v1420 = vld [vmem:[#allocation3 + $0x78] sm:$0xff]
        %v1421 = vld [vmem:[%s640] sm:$0xf]
        %v1422 = vld [vmem:[%s640 + $0x4] sm:$0xf]
        %v1423 = vld [vmem:[%s640 + $0x8] sm:$0xf]
        %v1424 = vld [vmem:[%s640 + $0xc] sm:$0xf]
        %v1425 = vld [vmem:[%s640 + $0x10] sm:$0xf]
        %v1426 = vld [vmem:[%s640 + $0x14] sm:$0xf]
        %v1427 = vld [vmem:[%s640 + $0x18] sm:$0xf]
        %v1428 = vld [vmem:[%s640 + $0x1c] sm:$0xf]
        %v1437 = vunpack.c.l.b16 %v1421
        %v1438 = vunpack.c.l.b16 %v1422
        %v1439 = vunpack.c.l.b16 %v1423
        %v1440 = vunpack.c.l.b16 %v1424
        %v1441 = vunpack.c.l.b16 %v1425
        %v1442 = vunpack.c.l.b16 %v1426
        %v1443 = vunpack.c.l.b16 %v1427
        %v1444 = vunpack.c.l.b16 %v1428
        %v1445 = vpack.c.b16 %v1438, %v1437
        %v1446 = vpack.c.b16 %v1440, %v1439
        %v1447 = vpack.c.b16 %v1442, %v1441
        %v1448 = vpack.c.b16 %v1444, %v1443
        %v1454 = vsel %vm948, %v1397, 0
        %v1457 = vsel %vm948, %v1398, 0
        %v1460 = vsel %vm948, %v1399, 0
        %v1463 = vsel %vm948, %v1400, 0
        %v1466 = vsel %vm948, %v1401, 0
        %v1469 = vsel %vm948, %v1402, 0
        %v1472 = vsel %vm948, %v1403, 0
        %v1475 = vsel %vm948, %v1404, 0
        %1477 = vmatprep.subr.bf16.mxu0 0
        %1478 = vmatpush1.bf16.msra.mxu0 %v1445
        %1479 = vmatprep.subr.bf16.mxu0 0
        %1480 = vmatpush1.bf16.msra.mxu0 %v1446
        %1481 = vmatprep.subr.bf16.mxu0 0
        %1482 = vmatpush1.bf16.msra.mxu0 %v1447
        %1483 = vmatprep.subr.bf16.mxu0 0
        %1484 = vmatpush1.bf16.msra.mxu0 %v1448
        %1485 = vmatprep.subr.bf16.mxu0 0
        %1486 = vmatpush1.bf16.msra.mxu0 0
        %1487 = vmatprep.subr.bf16.mxu0 0
        %1488 = vmatpush1.bf16.msra.mxu0 0
        %1489 = vmatprep.subr.bf16.mxu0 0
        %1490 = vmatpush1.bf16.msra.mxu0 0
        %1491 = vmatprep.subr.bf16.mxu0 0
        %1492 = vmatpush1.bf16.msra.mxu0 0
        %1493 = vmatprep.subr.bf16.mxu0 0
        %1494 = vmatpush1.bf16.msra.mxu0 0
        %1495 = vmatprep.subr.bf16.mxu0 0
        %1496 = vmatpush1.bf16.msra.mxu0 0
        %1497 = vmatprep.subr.bf16.mxu0 0
        %1498 = vmatpush1.bf16.msra.mxu0 0
        %1499 = vmatprep.subr.bf16.mxu0 0
        %1500 = vmatpush1.bf16.msra.mxu0 0
        %1501 = vmatprep.subr.bf16.mxu0 0
        %1502 = vmatpush1.bf16.msra.mxu0 0
        %1503 = vmatprep.subr.bf16.mxu0 0
        %1504 = vmatpush1.bf16.msra.mxu0 0
        %1505 = vmatprep.subr.bf16.mxu0 0
        %1506 = vmatpush1.bf16.msra.mxu0 0
        %1507 = vmatprep.subr.bf16.mxu0 0
        %1508 = vmatpush1.bf16.msra.mxu0 0
        %1509 = vmatprep.mubr.bf16.mxu0 0
        %1510 = vmatmul.mubr.bf16.gmra.mrb[0].mxu0 %v1454
        %v1511 = vpop.f32.mrb[0].mxu0
        %v1512 = vadd.f32 0.0, %v1511
        %v1513 = vpop.f32.mrb[0].mxu0
        %v1514 = vpop.f32.mrb[0].mxu0
        %v1515 = vadd.f32 0.0, %v1514
        %v1516 = vpop.f32.mrb[0].mxu0
        %1517 = vmatprep.mubr.bf16.mxu0 0
        %1518 = vmatmul.mubr.bf16.gmra.mrb[0].mxu0 %v1457
        %v1519 = vpop.f32.mrb[0].mxu0
        %v1520 = vadd.f32 0.0, %v1519
        %v1521 = vpop.f32.mrb[0].mxu0
        %v1522 = vpop.f32.mrb[0].mxu0
        %v1523 = vadd.f32 0.0, %v1522
        %v1524 = vpop.f32.mrb[0].mxu0
        %1525 = vmatprep.mubr.bf16.mxu0 0
        %1526 = vmatmul.mubr.bf16.gmra.mrb[0].mxu0 %v1460
        %v1527 = vpop.f32.mrb[0].mxu0
        %v1528 = vadd.f32 0.0, %v1527
        %v1529 = vpop.f32.mrb[0].mxu0
        %v1530 = vpop.f32.mrb[0].mxu0
        %v1531 = vadd.f32 0.0, %v1530
        %v1532 = vpop.f32.mrb[0].mxu0
        %1533 = vmatprep.mubr.bf16.mxu0 0
        %1534 = vmatmul.mubr.bf16.gmra.mrb[0].mxu0 %v1463
        %v1535 = vpop.f32.mrb[0].mxu0
        %v1536 = vadd.f32 0.0, %v1535
        %v1537 = vpop.f32.mrb[0].mxu0
        %v1538 = vpop.f32.mrb[0].mxu0
        %v1539 = vadd.f32 0.0, %v1538
        %v1540 = vpop.f32.mrb[0].mxu0
        %1541 = vmatprep.mubr.bf16.mxu0 0
        %1542 = vmatmul.mubr.bf16.gmra.mrb[0].mxu0 %v1466
        %v1543 = vpop.f32.mrb[0].mxu0
        %v1544 = vadd.f32 0.0, %v1543
        %v1545 = vpop.f32.mrb[0].mxu0
        %v1546 = vpop.f32.mrb[0].mxu0
        %v1547 = vadd.f32 0.0, %v1546
        %v1548 = vpop.f32.mrb[0].mxu0
        %1549 = vmatprep.mubr.bf16.mxu0 0
        %1550 = vmatmul.mubr.bf16.gmra.mrb[0].mxu0 %v1469
        %v1551 = vpop.f32.mrb[0].mxu0
        %v1552 = vadd.f32 0.0, %v1551
        %v1553 = vpop.f32.mrb[0].mxu0
        %v1554 = vpop.f32.mrb[0].mxu0
        %v1555 = vadd.f32 0.0, %v1554
        %v1556 = vpop.f32.mrb[0].mxu0
        %1557 = vmatprep.mubr.bf16.mxu0 0
        %1558 = vmatmul.mubr.bf16.gmra.mrb[0].mxu0 %v1472
        %v1559 = vpop.f32.mrb[0].mxu0
        %v1560 = vadd.f32 0.0, %v1559
        %v1561 = vpop.f32.mrb[0].mxu0
        %v1562 = vpop.f32.mrb[0].mxu0
        %v1563 = vadd.f32 0.0, %v1562
        %v1564 = vpop.f32.mrb[0].mxu0
        %1565 = vmatprep.mubr.bf16.mxu0 0
        %1566 = vmatmul.mubr.bf16.gmra.mrb[0].mxu0 %v1475
        %v1567 = vpop.f32.mrb[0].mxu0
        %v1568 = vadd.f32 0.0, %v1567
        %v1569 = vpop.f32.mrb[0].mxu0
        %v1570 = vpop.f32.mrb[0].mxu0
        %v1571 = vadd.f32 0.0, %v1570
        %v1572 = vpop.f32.mrb[0].mxu0
        %1573 = vdwg.mxu0
        %v1574 = vadd.f32 %v1405, %v1512
        %v1575 = vadd.f32 %v1406, %v1515
        %v1576 = vadd.f32 %v1407, %v1520
        %v1577 = vadd.f32 %v1408, %v1523
        %v1578 = vadd.f32 %v1409, %v1528
        %v1579 = vadd.f32 %v1410, %v1531
        %v1580 = vadd.f32 %v1411, %v1536
        %v1581 = vadd.f32 %v1412, %v1539
        %v1582 = vadd.f32 %v1413, %v1544
        %v1583 = vadd.f32 %v1414, %v1547
        %v1584 = vadd.f32 %v1415, %v1552
        %v1585 = vadd.f32 %v1416, %v1555
        %v1586 = vadd.f32 %v1417, %v1560
        %v1587 = vadd.f32 %v1418, %v1563
        %v1588 = vadd.f32 %v1419, %v1568
        %v1589 = vadd.f32 %v1420, %v1571
        %v1590 = vld [vmem:[%s558] sm:$0x1]
        %v1592 = vlaneseq
        %v1593 = vshrl.u32 %v1592, 7
        %v1594 = vsub.s32 0, %v1593
        %v1595 = vrot.slane %v1590, %v1594
        %v1597 = vadd.f32 %v1574, %v1595
        %v1598 = vadd.f32 %v1575, %v1595
        %v1599 = vadd.f32 %v1576, %v1595
        %v1600 = vadd.f32 %v1577, %v1595
        %v1601 = vadd.f32 %v1578, %v1595
        %v1602 = vadd.f32 %v1579, %v1595
        %v1603 = vadd.f32 %v1580, %v1595
        %v1604 = vadd.f32 %v1581, %v1595
        %v1605 = vadd.f32 %v1582, %v1595
        %v1606 = vadd.f32 %v1583, %v1595
        %v1607 = vadd.f32 %v1584, %v1595
        %v1608 = vadd.f32 %v1585, %v1595
        %v1609 = vadd.f32 %v1586, %v1595
        %v1610 = vadd.f32 %v1587, %v1595
        %v1611 = vadd.f32 %v1588, %v1595
        %v1612 = vadd.f32 %v1589, %v1595
        %1613 = vst.msk [vmem:[#allocation3] sm:$0xff] %vm948, %v1597
        %1614 = vst.msk [vmem:[#allocation3 + $0x8] sm:$0xff] %vm948, %v1598
        %1615 = vst.msk [vmem:[#allocation3 + $0x10] sm:$0xff] %vm948, %v1599
        %1616 = vst.msk [vmem:[#allocation3 + $0x18] sm:$0xff] %vm948, %v1600
        %1617 = vst.msk [vmem:[#allocation3 + $0x20] sm:$0xff] %vm948, %v1601
        %1618 = vst.msk [vmem:[#allocation3 + $0x28] sm:$0xff] %vm948, %v1602
        %1619 = vst.msk [vmem:[#allocation3 + $0x30] sm:$0xff] %vm948, %v1603
        %1620 = vst.msk [vmem:[#allocation3 + $0x38] sm:$0xff] %vm948, %v1604
        %1621 = vst.msk [vmem:[#allocation3 + $0x40] sm:$0xff] %vm948, %v1605
        %1622 = vst.msk [vmem:[#allocation3 + $0x48] sm:$0xff] %vm948, %v1606
        %1623 = vst.msk [vmem:[#allocation3 + $0x50] sm:$0xff] %vm948, %v1607
        %1624 = vst.msk [vmem:[#allocation3 + $0x58] sm:$0xff] %vm948, %v1608
        %1625 = vst.msk [vmem:[#allocation3 + $0x60] sm:$0xff] %vm948, %v1609
        %1626 = vst.msk [vmem:[#allocation3 + $0x68] sm:$0xff] %vm948, %v1610
        %1627 = vst.msk [vmem:[#allocation3 + $0x70] sm:$0xff] %vm948, %v1611
        %1628 = vst.msk [vmem:[#allocation3 + $0x78] sm:$0xff] %vm948, %v1612
        %v1629 = vld [vmem:[%s645] sm:$0xf]
        %v1630 = vld [vmem:[%s645 + $0x4] sm:$0xf]
        %v1631 = vld [vmem:[%s645 + $0x8] sm:$0xf]
        %v1632 = vld [vmem:[%s645 + $0xc] sm:$0xf]
        %v1633 = vld [vmem:[%s645 + $0x10] sm:$0xf]
        %v1634 = vld [vmem:[%s645 + $0x14] sm:$0xf]
        %v1635 = vld [vmem:[%s645 + $0x18] sm:$0xf]
        %v1636 = vld [vmem:[%s645 + $0x1c] sm:$0xf]
        %v1637 = vld [vmem:[%s648] sm:$0x1]
        %v1639 = vlaneseq
        %v1640 = vshrl.u32 %v1639, 7
        %v1641 = vsub.s32 0, %v1640
        %v1642 = vrot.slane %v1637, %v1641
        %v1652 = vunpack.c.l.b16 %v1629
        %v1653 = vunpack.c.l.b16 %v1630
        %v1654 = vunpack.c.l.b16 %v1631
        %v1655 = vunpack.c.l.b16 %v1632
        %v1656 = vunpack.c.l.b16 %v1633
        %v1657 = vunpack.c.l.b16 %v1634
        %v1658 = vunpack.c.l.b16 %v1635
        %v1659 = vunpack.c.l.b16 %v1636
        %v1660 = vpack.c.b16 %v1653, %v1652
        %v1661 = vpack.c.b16 %v1655, %v1654
        %v1662 = vpack.c.b16 %v1657, %v1656
        %v1663 = vpack.c.b16 %v1659, %v1658
        %1668 = vmatprep.subr.bf16.mxu0 0
        %1669 = vmatpush1.bf16.msra.mxu0 %v1660
        %1670 = vmatprep.subr.bf16.mxu0 0
        %1671 = vmatpush1.bf16.msra.mxu0 %v1661
        %1672 = vmatprep.subr.bf16.mxu0 0
        %1673 = vmatpush1.bf16.msra.mxu0 %v1662
        %1674 = vmatprep.subr.bf16.mxu0 0
        %1675 = vmatpush1.bf16.msra.mxu0 %v1663
        %1676 = vmatprep.subr.bf16.mxu0 0
        %1677 = vmatpush1.bf16.msra.mxu0 0
        %1678 = vmatprep.subr.bf16.mxu0 0
        %1679 = vmatpush1.bf16.msra.mxu0 0
        %1680 = vmatprep.subr.bf16.mxu0 0
        %1681 = vmatpush1.bf16.msra.mxu0 0
        %1682 = vmatprep.subr.bf16.mxu0 0
        %1683 = vmatpush1.bf16.msra.mxu0 0
        %1684 = vmatprep.subr.bf16.mxu0 0
        %1685 = vmatpush1.bf16.msra.mxu0 0
        %1686 = vmatprep.subr.bf16.mxu0 0
        %1687 = vmatpush1.bf16.msra.mxu0 0
        %1688 = vmatprep.subr.bf16.mxu0 0
        %1689 = vmatpush1.bf16.msra.mxu0 0
        %1690 = vmatprep.subr.bf16.mxu0 0
        %1691 = vmatpush1.bf16.msra.mxu0 0
        %1692 = vmatprep.subr.bf16.mxu0 0
        %1693 = vmatpush1.bf16.msra.mxu0 0
        %1694 = vmatprep.subr.bf16.mxu0 0
        %1695 = vmatpush1.bf16.msra.mxu0 0
        %1696 = vmatprep.subr.bf16.mxu0 0
        %1697 = vmatpush1.bf16.msra.mxu0 0
        %1698 = vmatprep.subr.bf16.mxu0 0
        %1699 = vmatpush1.bf16.msra.mxu0 0
        %1700 = vmatprep.mubr.bf16.mxu0 0
        %1701 = vmatmul.mubr.bf16.gmra.mrb[0].mxu0 %v1454
        %v1702 = vpop.f32.mrb[0].mxu0
        %v1703 = vadd.f32 %v1642, %v1702
        %v1704 = vpop.f32.mrb[0].mxu0
        %v1705 = vpop.f32.mrb[0].mxu0
        %v1706 = vadd.f32 %v1642, %v1705
        %v1707 = vpop.f32.mrb[0].mxu0
        %1708 = vmatprep.mubr.bf16.mxu0 0
        %1709 = vmatmul.mubr.bf16.gmra.mrb[0].mxu0 %v1457
        %v1710 = vpop.f32.mrb[0].mxu0
        %v1711 = vadd.f32 %v1642, %v1710
        %v1712 = vpop.f32.mrb[0].mxu0
        %v1713 = vpop.f32.mrb[0].mxu0
        %v1714 = vadd.f32 %v1642, %v1713
        %v1715 = vpop.f32.mrb[0].mxu0
        %1716 = vmatprep.mubr.bf16.mxu0 0
        %1717 = vmatmul.mubr.bf16.gmra.mrb[0].mxu0 %v1460
        %v1718 = vpop.f32.mrb[0].mxu0
        %v1719 = vadd.f32 %v1642, %v1718
        %v1720 = vpop.f32.mrb[0].mxu0
        %v1721 = vpop.f32.mrb[0].mxu0
        %v1722 = vadd.f32 %v1642, %v1721
        %v1723 = vpop.f32.mrb[0].mxu0
        %1724 = vmatprep.mubr.bf16.mxu0 0
        %1725 = vmatmul.mubr.bf16.gmra.mrb[0].mxu0 %v1463
        %v1726 = vpop.f32.mrb[0].mxu0
        %v1727 = vadd.f32 %v1642, %v1726
        %v1728 = vpop.f32.mrb[0].mxu0
        %v1729 = vpop.f32.mrb[0].mxu0
        %v1730 = vadd.f32 %v1642, %v1729
        %v1731 = vpop.f32.mrb[0].mxu0
        %1732 = vmatprep.mubr.bf16.mxu0 0
        %1733 = vmatmul.mubr.bf16.gmra.mrb[0].mxu0 %v1466
        %v1734 = vpop.f32.mrb[0].mxu0
        %v1735 = vadd.f32 %v1642, %v1734
        %v1736 = vpop.f32.mrb[0].mxu0
        %v1737 = vpop.f32.mrb[0].mxu0
        %v1738 = vadd.f32 %v1642, %v1737
        %v1739 = vpop.f32.mrb[0].mxu0
        %1740 = vmatprep.mubr.bf16.mxu0 0
        %1741 = vmatmul.mubr.bf16.gmra.mrb[0].mxu0 %v1469
        %v1742 = vpop.f32.mrb[0].mxu0
        %v1743 = vadd.f32 %v1642, %v1742
        %v1744 = vpop.f32.mrb[0].mxu0
        %v1745 = vpop.f32.mrb[0].mxu0
        %v1746 = vadd.f32 %v1642, %v1745
        %v1747 = vpop.f32.mrb[0].mxu0
        %1748 = vmatprep.mubr.bf16.mxu0 0
        %1749 = vmatmul.mubr.bf16.gmra.mrb[0].mxu0 %v1472
        %v1750 = vpop.f32.mrb[0].mxu0
        %v1751 = vadd.f32 %v1642, %v1750
        %v1752 = vpop.f32.mrb[0].mxu0
        %v1753 = vpop.f32.mrb[0].mxu0
        %v1754 = vadd.f32 %v1642, %v1753
        %v1755 = vpop.f32.mrb[0].mxu0
        %1756 = vmatprep.mubr.bf16.mxu0 0
        %1757 = vmatmul.mubr.bf16.gmra.mrb[0].mxu0 %v1475
        %v1758 = vpop.f32.mrb[0].mxu0
        %v1759 = vadd.f32 %v1642, %v1758
        %v1760 = vpop.f32.mrb[0].mxu0
        %v1761 = vpop.f32.mrb[0].mxu0
        %v1762 = vadd.f32 %v1642, %v1761
        %v1763 = vpop.f32.mrb[0].mxu0
        %1764 = vdwg.mxu0
        %v1765 = vadd.f32 %v1703, %v831
        %v1766 = vadd.f32 %v1706, %v832
        %v1767 = vadd.f32 %v1711, %v833
        %v1768 = vadd.f32 %v1714, %v834
        %v1769 = vadd.f32 %v1719, %v835
        %v1770 = vadd.f32 %v1722, %v836
        %v1771 = vadd.f32 %v1727, %v837
        %v1772 = vadd.f32 %v1730, %v838
        %v1773 = vadd.f32 %v1735, %v839
        %v1774 = vadd.f32 %v1738, %v840
        %v1775 = vadd.f32 %v1743, %v841
        %v1776 = vadd.f32 %v1746, %v842
        %v1777 = vadd.f32 %v1751, %v843
        %v1778 = vadd.f32 %v1754, %v844
        %v1779 = vadd.f32 %v1759, %v845
        %v1780 = vadd.f32 %v1762, %v846
        %v1781 = vmul.f32 %v1765, 0.70710677
        %v1782 = vmul.f32 %v1766, 0.70710677
        %v1783 = vmul.f32 %v1767, 0.70710677
        %v1784 = vmul.f32 %v1768, 0.70710677
        %v1785 = vmul.f32 %v1769, 0.70710677
        %v1786 = vmul.f32 %v1770, 0.70710677
        %v1787 = vmul.f32 %v1771, 0.70710677
        %v1788 = vmul.f32 %v1772, 0.70710677
        %v1789 = vmul.f32 %v1773, 0.70710677
        %v1790 = vmul.f32 %v1774, 0.70710677
        %v1791 = vmul.f32 %v1775, 0.70710677
        %v1792 = vmul.f32 %v1776, 0.70710677
        %v1793 = vmul.f32 %v1777, 0.70710677
        %v1794 = vmul.f32 %v1778, 0.70710677
        %v1795 = vmul.f32 %v1779, 0.70710677
        %v1796 = vmul.f32 %v1780, 0.70710677
        %1797 = vst.msk [vmem:[#allocation2 + $0x8] sm:$0xff] %vm948, %v1781
        %1798 = vst.msk [vmem:[#allocation2 + $0x10] sm:$0xff] %vm948, %v1782
        %1799 = vst.msk [vmem:[#allocation2 + $0x18] sm:$0xff] %vm948, %v1783
        %1800 = vst.msk [vmem:[#allocation2 + $0x20] sm:$0xff] %vm948, %v1784
        %1801 = vst.msk [vmem:[#allocation2 + $0x28] sm:$0xff] %vm948, %v1785
        %1802 = vst.msk [vmem:[#allocation2 + $0x30] sm:$0xff] %vm948, %v1786
        %1803 = vst.msk [vmem:[#allocation2 + $0x38] sm:$0xff] %vm948, %v1787
        %1804 = vst.msk [vmem:[#allocation2 + $0x40] sm:$0xff] %vm948, %v1788
        %1805 = vst.msk [vmem:[#allocation2 + $0x48] sm:$0xff] %vm948, %v1789
        %1806 = vst.msk [vmem:[#allocation2 + $0x50] sm:$0xff] %vm948, %v1790
        %1807 = vst.msk [vmem:[#allocation2 + $0x58] sm:$0xff] %vm948, %v1791
        %1808 = vst.msk [vmem:[#allocation2 + $0x60] sm:$0xff] %vm948, %v1792
        %1809 = vst.msk [vmem:[#allocation2 + $0x68] sm:$0xff] %vm948, %v1793
        %1810 = vst.msk [vmem:[#allocation2 + $0x70] sm:$0xff] %vm948, %v1794
        %1811 = vst.msk [vmem:[#allocation2 + $0x78] sm:$0xff] %vm948, %v1795
        %1812 = vst.msk [vmem:[#allocation2 + $0x80] sm:$0xff] %vm948, %v1796
        %p1813 = scmp.eq.s32.totalorder %s39, 3
        // Predicated region
        $region101: #{tpu_custom_call.1} parent=71 // pred_check
          %p1814 = pneg %p1813
        $region102: #{tpu_custom_call.1} parent=71 // pred_check_branch
          %1816 = sbr.rel (%p1814) target = $region104
        $region103: #{tpu_custom_call.1} parent=71 // pred_region
          %v1817 = vld [vmem:[#allocation3] sm:$0xff]
          %v1818 = vld [vmem:[#allocation3 + $0x8] sm:$0xff]
          %v1819 = vld [vmem:[#allocation3 + $0x10] sm:$0xff]
          %v1820 = vld [vmem:[#allocation3 + $0x18] sm:$0xff]
          %v1821 = vld [vmem:[#allocation3 + $0x20] sm:$0xff]
          %v1822 = vld [vmem:[#allocation3 + $0x28] sm:$0xff]
          %v1823 = vld [vmem:[#allocation3 + $0x30] sm:$0xff]
          %v1824 = vld [vmem:[#allocation3 + $0x38] sm:$0xff]
          %v1825 = vld [vmem:[#allocation3 + $0x40] sm:$0xff]
          %v1826 = vld [vmem:[#allocation3 + $0x48] sm:$0xff]
          %v1827 = vld [vmem:[#allocation3 + $0x50] sm:$0xff]
          %v1828 = vld [vmem:[#allocation3 + $0x58] sm:$0xff]
          %v1829 = vld [vmem:[#allocation3 + $0x60] sm:$0xff]
          %v1830 = vld [vmem:[#allocation3 + $0x68] sm:$0xff]
          %v1831 = vld [vmem:[#allocation3 + $0x70] sm:$0xff]
          %v1832 = vld [vmem:[#allocation3 + $0x78] sm:$0xff]
          %v1833 = vmul.f32 %v1817, 0.5
          %v1834 = vmul.f32 %v1818, 0.5
          %v1835 = vmul.f32 %v1819, 0.5
          %v1836 = vmul.f32 %v1820, 0.5
          %v1837 = vmul.f32 %v1821, 0.5
          %v1838 = vmul.f32 %v1822, 0.5
          %v1839 = vmul.f32 %v1823, 0.5
          %v1840 = vmul.f32 %v1824, 0.5
          %v1841 = vmul.f32 %v1825, 0.5
          %v1842 = vmul.f32 %v1826, 0.5
          %v1843 = vmul.f32 %v1827, 0.5
          %v1844 = vmul.f32 %v1828, 0.5
          %v1845 = vmul.f32 %v1829, 0.5
          %v1846 = vmul.f32 %v1830, 0.5
          %v1847 = vmul.f32 %v1831, 0.5
          %v1848 = vmul.f32 %v1832, 0.5
          %v1849 = vmax.f32 %v1833, 0.0
          %v1850 = vmax.f32 %v1834, 0.0
          %v1851 = vmax.f32 %v1835, 0.0
          %v1852 = vmax.f32 %v1836, 0.0
          %v1853 = vmax.f32 %v1837, 0.0
          %v1854 = vmax.f32 %v1838, 0.0
          %v1855 = vmax.f32 %v1839, 0.0
          %v1856 = vmax.f32 %v1840, 0.0
          %v1857 = vmax.f32 %v1841, 0.0
          %v1858 = vmax.f32 %v1842, 0.0
          %v1859 = vmax.f32 %v1843, 0.0
          %v1860 = vmax.f32 %v1844, 0.0
          %v1861 = vmax.f32 %v1845, 0.0
          %v1862 = vmax.f32 %v1846, 0.0
          %v1863 = vmax.f32 %v1847, 0.0
          %v1864 = vmax.f32 %v1848, 0.0
          %v1865 = vpack.c.bf16 %v1850, %v1849
          %v1866 = vpack.c.bf16 %v1852, %v1851
          %v1867 = vpack.c.bf16 %v1854, %v1853
          %v1868 = vpack.c.bf16 %v1856, %v1855
          %v1869 = vpack.c.bf16 %v1858, %v1857
          %v1870 = vpack.c.bf16 %v1860, %v1859
          %v1871 = vpack.c.bf16 %v1862, %v1861
          %v1872 = vpack.c.bf16 %v1864, %v1863
          %v1873 = vld [vmem:[%s10] sm:$0xf]
          %v1874 = vld [vmem:[%s10 + $0x4] sm:$0xf]
          %v1875 = vld [vmem:[%s10 + $0x8] sm:$0xf]
          %v1876 = vld [vmem:[%s10 + $0xc] sm:$0xf]
          %v1877 = vld [vmem:[%s10 + $0x10] sm:$0xf]
          %v1878 = vld [vmem:[%s10 + $0x14] sm:$0xf]
          %v1879 = vld [vmem:[%s10 + $0x18] sm:$0xf]
          %v1880 = vld [vmem:[%s10 + $0x1c] sm:$0xf]
          %v1881 = vld [vmem:[%s11] sm:$0x1]
          %v1883 = vlaneseq
          %v1884 = vshrl.u32 %v1883, 7
          %v1885 = vsub.s32 0, %v1884
          %v1886 = vrot.slane %v1881, %v1885
          %v1896 = vunpack.c.l.b16 %v1873
          %v1897 = vunpack.c.l.b16 %v1874
          %v1898 = vunpack.c.l.b16 %v1875
          %v1899 = vunpack.c.l.b16 %v1876
          %v1900 = vunpack.c.l.b16 %v1877
          %v1901 = vunpack.c.l.b16 %v1878
          %v1902 = vunpack.c.l.b16 %v1879
          %v1903 = vunpack.c.l.b16 %v1880
          %v1904 = vpack.c.b16 %v1897, %v1896
          %v1905 = vpack.c.b16 %v1899, %v1898
          %v1906 = vpack.c.b16 %v1901, %v1900
          %v1907 = vpack.c.b16 %v1903, %v1902
          %v1913 = vsel %vm948, %v1865, 0
          %v1916 = vsel %vm948, %v1866, 0
          %v1919 = vsel %vm948, %v1867, 0
          %v1922 = vsel %vm948, %v1868, 0
          %v1925 = vsel %vm948, %v1869, 0
          %v1928 = vsel %vm948, %v1870, 0
          %v1931 = vsel %vm948, %v1871, 0
          %v1934 = vsel %vm948, %v1872, 0
          %1936 = vmatprep.subr.bf16.mxu0 0
          %1937 = vmatpush1.bf16.msra.mxu0 %v1904
          %1938 = vmatprep.subr.bf16.mxu0 0
          %1939 = vmatpush1.bf16.msra.mxu0 %v1905
          %1940 = vmatprep.subr.bf16.mxu0 0
          %1941 = vmatpush1.bf16.msra.mxu0 %v1906
          %1942 = vmatprep.subr.bf16.mxu0 0
          %1943 = vmatpush1.bf16.msra.mxu0 %v1907
          %1944 = vmatprep.subr.bf16.mxu0 0
          %1945 = vmatpush1.bf16.msra.mxu0 0
          %1946 = vmatprep.subr.bf16.mxu0 0
          %1947 = vmatpush1.bf16.msra.mxu0 0
          %1948 = vmatprep.subr.bf16.mxu0 0
          %1949 = vmatpush1.bf16.msra.mxu0 0
          %1950 = vmatprep.subr.bf16.mxu0 0
          %1951 = vmatpush1.bf16.msra.mxu0 0
          %1952 = vmatprep.subr.bf16.mxu0 0
          %1953 = vmatpush1.bf16.msra.mxu0 0
          %1954 = vmatprep.subr.bf16.mxu0 0
          %1955 = vmatpush1.bf16.msra.mxu0 0
          %1956 = vmatprep.subr.bf16.mxu0 0
          %1957 = vmatpush1.bf16.msra.mxu0 0
          %1958 = vmatprep.subr.bf16.mxu0 0
          %1959 = vmatpush1.bf16.msra.mxu0 0
          %1960 = vmatprep.subr.bf16.mxu0 0
          %1961 = vmatpush1.bf16.msra.mxu0 0
          %1962 = vmatprep.subr.bf16.mxu0 0
          %1963 = vmatpush1.bf16.msra.mxu0 0
          %1964 = vmatprep.subr.bf16.mxu0 0
          %1965 = vmatpush1.bf16.msra.mxu0 0
          %1966 = vmatprep.subr.bf16.mxu0 0
          %1967 = vmatpush1.bf16.msra.mxu0 0
          %1968 = vmatprep.mubr.bf16.mxu0 0
          %1969 = vmatmul.mubr.bf16.gmra.mrb[0].mxu0 %v1913
          %v1970 = vpop.f32.mrb[0].mxu0
          %v1971 = vadd.f32 %v1886, %v1970
          %v1972 = vpop.f32.mrb[0].mxu0
          %v1973 = vpop.f32.mrb[0].mxu0
          %v1974 = vadd.f32 %v1886, %v1973
          %v1975 = vpop.f32.mrb[0].mxu0
          %1976 = vmatprep.mubr.bf16.mxu0 0
          %1977 = vmatmul.mubr.bf16.gmra.mrb[0].mxu0 %v1916
          %v1978 = vpop.f32.mrb[0].mxu0
          %v1979 = vadd.f32 %v1886, %v1978
          %v1980 = vpop.f32.mrb[0].mxu0
          %v1981 = vpop.f32.mrb[0].mxu0
          %v1982 = vadd.f32 %v1886, %v1981
          %v1983 = vpop.f32.mrb[0].mxu0
          %1984 = vmatprep.mubr.bf16.mxu0 0
          %1985 = vmatmul.mubr.bf16.gmra.mrb[0].mxu0 %v1919
          %v1986 = vpop.f32.mrb[0].mxu0
          %v1987 = vadd.f32 %v1886, %v1986
          %v1988 = vpop.f32.mrb[0].mxu0
          %v1989 = vpop.f32.mrb[0].mxu0
          %v1990 = vadd.f32 %v1886, %v1989
          %v1991 = vpop.f32.mrb[0].mxu0
          %1992 = vmatprep.mubr.bf16.mxu0 0
          %1993 = vmatmul.mubr.bf16.gmra.mrb[0].mxu0 %v1922
          %v1994 = vpop.f32.mrb[0].mxu0
          %v1995 = vadd.f32 %v1886, %v1994
          %v1996 = vpop.f32.mrb[0].mxu0
          %v1997 = vpop.f32.mrb[0].mxu0
          %v1998 = vadd.f32 %v1886, %v1997
          %v1999 = vpop.f32.mrb[0].mxu0
          %2000 = vmatprep.mubr.bf16.mxu0 0
          %2001 = vmatmul.mubr.bf16.gmra.mrb[0].mxu0 %v1925
          %v2002 = vpop.f32.mrb[0].mxu0
          %v2003 = vadd.f32 %v1886, %v2002
          %v2004 = vpop.f32.mrb[0].mxu0
          %v2005 = vpop.f32.mrb[0].mxu0
          %v2006 = vadd.f32 %v1886, %v2005
          %v2007 = vpop.f32.mrb[0].mxu0
          %2008 = vmatprep.mubr.bf16.mxu0 0
          %2009 = vmatmul.mubr.bf16.gmra.mrb[0].mxu0 %v1928
          %v2010 = vpop.f32.mrb[0].mxu0
          %v2011 = vadd.f32 %v1886, %v2010
          %v2012 = vpop.f32.mrb[0].mxu0
          %v2013 = vpop.f32.mrb[0].mxu0
          %v2014 = vadd.f32 %v1886, %v2013
          %v2015 = vpop.f32.mrb[0].mxu0
          %2016 = vmatprep.mubr.bf16.mxu0 0
          %2017 = vmatmul.mubr.bf16.gmra.mrb[0].mxu0 %v1931
          %v2018 = vpop.f32.mrb[0].mxu0
          %v2019 = vadd.f32 %v1886, %v2018
          %v2020 = vpop.f32.mrb[0].mxu0
          %v2021 = vpop.f32.mrb[0].mxu0
          %v2022 = vadd.f32 %v1886, %v2021
          %v2023 = vpop.f32.mrb[0].mxu0
          %2024 = vmatprep.mubr.bf16.mxu0 0
          %2025 = vmatmul.mubr.bf16.gmra.mrb[0].mxu0 %v1934
          %v2026 = vpop.f32.mrb[0].mxu0
          %v2027 = vadd.f32 %v1886, %v2026
          %v2028 = vpop.f32.mrb[0].mxu0
          %v2029 = vpop.f32.mrb[0].mxu0
          %v2030 = vadd.f32 %v1886, %v2029
          %v2031 = vpop.f32.mrb[0].mxu0
          %2032 = vdwg.mxu0
          %v2033 = vmax.f32 %v1971, 0.0
          %v2034 = vmax.f32 %v1974, 0.0
          %v2035 = vmax.f32 %v1979, 0.0
          %v2036 = vmax.f32 %v1982, 0.0
          %v2037 = vmax.f32 %v1987, 0.0
          %v2038 = vmax.f32 %v1990, 0.0
          %v2039 = vmax.f32 %v1995, 0.0
          %v2040 = vmax.f32 %v1998, 0.0
          %v2041 = vmax.f32 %v2003, 0.0
          %v2042 = vmax.f32 %v2006, 0.0
          %v2043 = vmax.f32 %v2011, 0.0
          %v2044 = vmax.f32 %v2014, 0.0
          %v2045 = vmax.f32 %v2019, 0.0
          %v2046 = vmax.f32 %v2022, 0.0
          %v2047 = vmax.f32 %v2027, 0.0
          %v2048 = vmax.f32 %v2030, 0.0
          %v2049 = vpack.c.bf16 %v2034, %v2033
          %v2050 = vpack.c.bf16 %v2036, %v2035
          %v2051 = vpack.c.bf16 %v2038, %v2037
          %v2052 = vpack.c.bf16 %v2040, %v2039
          %v2053 = vpack.c.bf16 %v2042, %v2041
          %v2054 = vpack.c.bf16 %v2044, %v2043
          %v2055 = vpack.c.bf16 %v2046, %v2045
          %v2056 = vpack.c.bf16 %v2048, %v2047
          %v2057 = vld [vmem:[#allocation14] sm:$0xf]
          %v2058 = vld [vmem:[#allocation14 + $0x4] sm:$0xf]
          %v2059 = vld [vmem:[#allocation14 + $0x8] sm:$0xf]
          %v2060 = vld [vmem:[#allocation14 + $0xc] sm:$0xf]
          %v2061 = vld [vmem:[#allocation14 + $0x10] sm:$0xf]
          %v2062 = vld [vmem:[#allocation14 + $0x14] sm:$0xf]
          %v2063 = vld [vmem:[#allocation14 + $0x18] sm:$0xf]
          %v2064 = vld [vmem:[#allocation14 + $0x1c] sm:$0xf]
          %v2065 = vld [vmem:[%s13] sm:$0x1]
          %v2067 = vlaneseq
          %v2068 = vshrl.u32 %v2067, 7
          %v2069 = vsub.s32 0, %v2068
          %v2070 = vrot.slane %v2065, %v2069
          %v2080 = vunpack.c.l.b16 %v2057
          %v2081 = vunpack.c.l.b16 %v2058
          %v2082 = vunpack.c.l.b16 %v2059
          %v2083 = vunpack.c.l.b16 %v2060
          %v2084 = vunpack.c.l.b16 %v2061
          %v2085 = vunpack.c.l.b16 %v2062
          %v2086 = vunpack.c.l.b16 %v2063
          %v2087 = vunpack.c.l.b16 %v2064
          %v2088 = vpack.c.b16 %v2081, %v2080
          %v2089 = vpack.c.b16 %v2083, %v2082
          %v2090 = vpack.c.b16 %v2085, %v2084
          %v2091 = vpack.c.b16 %v2087, %v2086
          %v2097 = vsel %vm948, %v2049, 0
          %v2100 = vsel %vm948, %v2050, 0
          %v2103 = vsel %vm948, %v2051, 0
          %v2106 = vsel %vm948, %v2052, 0
          %v2109 = vsel %vm948, %v2053, 0
          %v2112 = vsel %vm948, %v2054, 0
          %v2115 = vsel %vm948, %v2055, 0
          %v2118 = vsel %vm948, %v2056, 0
          %2120 = vmatprep.subr.bf16.mxu0 0
          %2121 = vmatpush1.bf16.msra.mxu0 %v2088
          %2122 = vmatprep.subr.bf16.mxu0 0
          %2123 = vmatpush1.bf16.msra.mxu0 %v2089
          %2124 = vmatprep.subr.bf16.mxu0 0
          %2125 = vmatpush1.bf16.msra.mxu0 %v2090
          %2126 = vmatprep.subr.bf16.mxu0 0
          %2127 = vmatpush1.bf16.msra.mxu0 %v2091
          %2128 = vmatprep.subr.bf16.mxu0 0
          %2129 = vmatpush1.bf16.msra.mxu0 0
          %2130 = vmatprep.subr.bf16.mxu0 0
          %2131 = vmatpush1.bf16.msra.mxu0 0
          %2132 = vmatprep.subr.bf16.mxu0 0
          %2133 = vmatpush1.bf16.msra.mxu0 0
          %2134 = vmatprep.subr.bf16.mxu0 0
          %2135 = vmatpush1.bf16.msra.mxu0 0
          %2136 = vmatprep.subr.bf16.mxu0 0
          %2137 = vmatpush1.bf16.msra.mxu0 0
          %2138 = vmatprep.subr.bf16.mxu0 0
          %2139 = vmatpush1.bf16.msra.mxu0 0
          %2140 = vmatprep.subr.bf16.mxu0 0
          %2141 = vmatpush1.bf16.msra.mxu0 0
          %2142 = vmatprep.subr.bf16.mxu0 0
          %2143 = vmatpush1.bf16.msra.mxu0 0
          %2144 = vmatprep.subr.bf16.mxu0 0
          %2145 = vmatpush1.bf16.msra.mxu0 0
          %2146 = vmatprep.subr.bf16.mxu0 0
          %2147 = vmatpush1.bf16.msra.mxu0 0
          %2148 = vmatprep.subr.bf16.mxu0 0
          %2149 = vmatpush1.bf16.msra.mxu0 0
          %2150 = vmatprep.subr.bf16.mxu0 0
          %2151 = vmatpush1.bf16.msra.mxu0 0
          %2152 = vmatprep.mubr.bf16.mxu0 0
          %2153 = vmatmul.mubr.bf16.gmra.mrb[0].mxu0 %v2097
          %v2154 = vpop.f32.mrb[0].mxu0
          %v2155 = vadd.f32 %v2070, %v2154
          %v2156 = vpop.f32.mrb[0].mxu0
          %v2157 = vpop.f32.mrb[0].mxu0
          %v2158 = vadd.f32 %v2070, %v2157
          %v2159 = vpop.f32.mrb[0].mxu0
          %2160 = vmatprep.mubr.bf16.mxu0 0
          %2161 = vmatmul.mubr.bf16.gmra.mrb[0].mxu0 %v2100
          %v2162 = vpop.f32.mrb[0].mxu0
          %v2163 = vadd.f32 %v2070, %v2162
          %v2164 = vpop.f32.mrb[0].mxu0
          %v2165 = vpop.f32.mrb[0].mxu0
          %v2166 = vadd.f32 %v2070, %v2165
          %v2167 = vpop.f32.mrb[0].mxu0
          %2168 = vmatprep.mubr.bf16.mxu0 0
          %2169 = vmatmul.mubr.bf16.gmra.mrb[0].mxu0 %v2103
          %v2170 = vpop.f32.mrb[0].mxu0
          %v2171 = vadd.f32 %v2070, %v2170
          %v2172 = vpop.f32.mrb[0].mxu0
          %v2173 = vpop.f32.mrb[0].mxu0
          %v2174 = vadd.f32 %v2070, %v2173
          %v2175 = vpop.f32.mrb[0].mxu0
          %2176 = vmatprep.mubr.bf16.mxu0 0
          %2177 = vmatmul.mubr.bf16.gmra.mrb[0].mxu0 %v2106
          %v2178 = vpop.f32.mrb[0].mxu0
          %v2179 = vadd.f32 %v2070, %v2178
          %v2180 = vpop.f32.mrb[0].mxu0
          %v2181 = vpop.f32.mrb[0].mxu0
          %v2182 = vadd.f32 %v2070, %v2181
          %v2183 = vpop.f32.mrb[0].mxu0
          %2184 = vmatprep.mubr.bf16.mxu0 0
          %2185 = vmatmul.mubr.bf16.gmra.mrb[0].mxu0 %v2109
          %v2186 = vpop.f32.mrb[0].mxu0
          %v2187 = vadd.f32 %v2070, %v2186
          %v2188 = vpop.f32.mrb[0].mxu0
          %v2189 = vpop.f32.mrb[0].mxu0
          %v2190 = vadd.f32 %v2070, %v2189
          %v2191 = vpop.f32.mrb[0].mxu0
          %2192 = vmatprep.mubr.bf16.mxu0 0
          %2193 = vmatmul.mubr.bf16.gmra.mrb[0].mxu0 %v2112
          %v2194 = vpop.f32.mrb[0].mxu0
          %v2195 = vadd.f32 %v2070, %v2194
          %v2196 = vpop.f32.mrb[0].mxu0
          %v2197 = vpop.f32.mrb[0].mxu0
          %v2198 = vadd.f32 %v2070, %v2197
          %v2199 = vpop.f32.mrb[0].mxu0
          %2200 = vmatprep.mubr.bf16.mxu0 0
          %2201 = vmatmul.mubr.bf16.gmra.mrb[0].mxu0 %v2115
          %v2202 = vpop.f32.mrb[0].mxu0
          %v2203 = vadd.f32 %v2070, %v2202
          %v2204 = vpop.f32.mrb[0].mxu0
          %v2205 = vpop.f32.mrb[0].mxu0
          %v2206 = vadd.f32 %v2070, %v2205
          %v2207 = vpop.f32.mrb[0].mxu0
          %2208 = vmatprep.mubr.bf16.mxu0 0
          %2209 = vmatmul.mubr.bf16.gmra.mrb[0].mxu0 %v2118
          %v2210 = vpop.f32.mrb[0].mxu0
          %v2211 = vadd.f32 %v2070, %v2210
          %v2212 = vpop.f32.mrb[0].mxu0
          %v2213 = vpop.f32.mrb[0].mxu0
          %v2214 = vadd.f32 %v2070, %v2213
          %v2215 = vpop.f32.mrb[0].mxu0
          %2216 = vdwg.mxu0
          %2217 = vst [vmem:[%s630] sm:$0xff] %v2155
          %2218 = vst [vmem:[%s630 + $0x8] sm:$0xff] %v2158
          %2219 = vst [vmem:[%s630 + $0x10] sm:$0xff] %v2163
          %2220 = vst [vmem:[%s630 + $0x18] sm:$0xff] %v2166
          %2221 = vst [vmem:[%s630 + $0x20] sm:$0xff] %v2171
          %2222 = vst [vmem:[%s630 + $0x28] sm:$0xff] %v2174
          %2223 = vst [vmem:[%s630 + $0x30] sm:$0xff] %v2179
          %2224 = vst [vmem:[%s630 + $0x38] sm:$0xff] %v2182
          %2225 = vst [vmem:[%s630 + $0x40] sm:$0xff] %v2187
          %2226 = vst [vmem:[%s630 + $0x48] sm:$0xff] %v2190
          %2227 = vst [vmem:[%s630 + $0x50] sm:$0xff] %v2195
          %2228 = vst [vmem:[%s630 + $0x58] sm:$0xff] %v2198
          %2229 = vst [vmem:[%s630 + $0x60] sm:$0xff] %v2203
          %2230 = vst [vmem:[%s630 + $0x68] sm:$0xff] %v2206
          %2231 = vst [vmem:[%s630 + $0x70] sm:$0xff] %v2211
          %2232 = vst [vmem:[%s630 + $0x78] sm:$0xff] %v2214
        $region104: #{tpu_custom_call.1} parent=71 // pred_fallthru
          _
        %s2233 = sand.u32 %s362, 1
        %s2234 = scalar_lea.sflag [#allocation8], %s2233
        %s2235 = sand.u32 %s362, 1
        %s2236 = smul.addr %s2235, 128
        %s2237 = scalar_lea.vmem [#allocation15], %s2236
        // Predicated region
        $region105: #{tpu_custom_call.1} parent=71 // pred_check
          %p2238 = pneg %p372
        $region106: #{tpu_custom_call.1} parent=71 // pred_check_branch
          %2240 = sbr.rel (%p2238) target = $region108
        $region107: #{tpu_custom_call.1} parent=71 // pred_region
          %s2242 = ssub.s32 2048, 2048
          %2243 = vsyncadd %s2234, %s2242
          %s2244 = smul.addr %s38, 16
          %s2245 = smul.addr %s2244, 128
          %s2246 = scalar_lea.hbm %s14, %s2245
          %s2247 = sshll.u32 %s2237, 4
          %s2248 = int_to_ptr.vmem [resolvable:$true] %s2247
          %2253 = dma.vmem_to_hbm [thread:$0]  %s2248, 2048, %s2246, %s2234, 128, 128, 8
        $region108: #{tpu_custom_call.1} parent=71 // pred_fallthru
          _
      $region72: #{tpu_custom_call.1} parent=5 // pred_fallthru
        _
      %p2254 = scmp.le.s32.totalorder 2, %s29
      // Predicated region
      $region109: #{tpu_custom_call.1} parent=5 // pred_check
        %p2255 = pneg %p2254
      $region110: #{tpu_custom_call.1} parent=5 // pred_check_branch
        %2257 = sbr.rel (%p2255) target = $region112
      $region111: #{tpu_custom_call.1} parent=5 // pred_region
        %s2258 = ssub.s32 %s29, 2
        // Predicated region
        $region113: #{tpu_custom_call.1} parent=111 // pred_check
          %p2259 = pneg %p378
        $region114: #{tpu_custom_call.1} parent=111 // pred_check_branch
          %2261 = sbr.rel (%p2259) target = $region116
        $region115: #{tpu_custom_call.1} parent=111 // pred_region
          %s2262 = sand.u32 %s363, 1
          %s2263 = scalar_lea.sflag [#allocation8], %s2262
          %s2264 = sand.u32 %s363, 1
          %s2265 = smul.addr %s2264, 128
          %s2266 = scalar_lea.vmem [#allocation15], %s2265
          %2267 = dma.done %s2263, 2048
        $region116: #{tpu_custom_call.1} parent=111 // pred_fallthru
          _
      $region112: #{tpu_custom_call.1} parent=5 // pred_fallthru
        _
    $region6: #{tpu_custom_call.1} parent=1 // loop_footer
      %s33 = sadd.s32 1, %s29
    $region7: #{tpu_custom_call.1} parent=1 // loop_footer_branch
      %28 = sbr.rel target = $region3
    $region8: #{tpu_custom_call.1} parent=1 // loop_exit
      _
    %2268 = vsyncpa [#allocation7], 1
    %s2269 = scalar_lea.sflag [#allocation7], 1
    %2270 = vsyncpa %s2269, 1
    %2271 = vsyncpa [#allocation10], 1
    %2272 = vsyncpa [#allocation8], 1
    %s2273 = scalar_lea.sflag [#allocation8], 1
    %2274 = vsyncpa %s2273, 1

</llo_original>
